<compile_context>
chip_gen: v7x
topology: tpu7x:2x2x1
jax: 0.10.0
libtpu: 0.0.40
codegen_flags: <defaults>
</compile_context>

<pallas_src>
import jax
import jax.numpy as jnp
from jax import lax
from jax.experimental import pallas as pl
from jax.experimental.pallas import tpu as pltpu

# ----------------------- model config (small, synthetic) --------------------
BSZ = 2
SEQ_LEN = 8
VOCAB = 32
EMB_DIM = 16
HIDDEN = 32          # params.hidden_dim
BIDIR = True
NUM_SLOT = 8
OUT_HIDDEN = HIDDEN * 2 if BIDIR else HIDDEN
S_PAD = 128          # lane-dense slot head width


# ------------------------------ Pallas kernel -------------------------------
def _make_kernel(T, Bp, H):
    def slu_tagger_kernel(gx_ref,     # (T, Bp, 8H) pre-projected gate inputs
                                      #   [:, :, :4H] = fwd gates for time t
                                      #   [:, :, 4H:] = bwd gates for time T-1-t
                          whh_ref,    # (2H, 8H) block-diag [[whh_f,0],[0,whh_b]]
                          wlin_ref,   # (2H, S_PAD) slot head (zero-padded)
                          blin_ref,   # (1, S_PAD)
                          out_ref):   # (T*Bp, S_PAD) time-major logits
        whh = whh_ref[...]                                    # (2H, 8H)

        zeros = jnp.zeros((Bp, H), jnp.float32)
        h_f, c_f = zeros, zeros
        h_b, c_b = zeros, zeros
        hs_f = []
        hs_b = []

        # fused fwd+bwd recurrence, fully unrolled, state lives in vregs
        for t in range(T):
            gx_t = gx_ref[t]                                  # (Bp, 8H), aligned vld
            h_cat = jnp.concatenate([h_f, h_b], axis=1)       # (Bp, 2H)
            # one MXU push covers both directions (block-diagonal whh)
            gates = gx_t + jnp.dot(h_cat, whh,
                                   preferred_element_type=jnp.float32)  # (Bp, 8H)
            sg = jax.nn.sigmoid(gates)    # one full-width EUP pass
            tg = jnp.tanh(gates)          # one full-width EUP pass
            # PyTorch nn.LSTM gate order: i, f, g, o (per direction)
            i_f = sg[:, 0 * H:1 * H]
            f_f = sg[:, 1 * H:2 * H]
            g_f = tg[:, 2 * H:3 * H]
            o_f = sg[:, 3 * H:4 * H]
            i_b = sg[:, 4 * H:5 * H]
            f_b = sg[:, 5 * H:6 * H]
            g_b = tg[:, 6 * H:7 * H]
            o_b = sg[:, 7 * H:8 * H]
            c_f = f_f * c_f + i_f * g_f
            h_f = o_f * jnp.tanh(c_f)
            c_b = f_b * c_b + i_b * g_b
            h_b = o_b * jnp.tanh(c_b)
            hs_f.append(h_f)              # step t  -> time t
            hs_b.append(h_b)              # step t  -> time T-1-t

        # time-ordered hidden histories, built in registers (no VMEM scratch)
        Hf = jnp.concatenate(hs_f, axis=0)          # (T*Bp, H)
        Hb = jnp.concatenate(hs_b[::-1], axis=0)    # (T*Bp, H), time order restored

        # lane-dense slot head: concat-free via split wlin, one dense store
        wlin = wlin_ref[...]
        out_ref[...] = (
            jnp.dot(Hf, wlin[0:H, :], preferred_element_type=jnp.float32)
            + jnp.dot(Hb, wlin[H:2 * H, :], preferred_element_type=jnp.float32)
            + blin_ref[...])

    return slu_tagger_kernel


# ------------------------------- wrapper -------------------------------------
def slu_tagger_forward(X, params):
    """X: (bsz, seq_len) int32 token ids -> prediction (bsz, seq_len, num_slot)."""
    B, T = X.shape
    H = HIDDEN
    Bp = max(8, -(-B // 8) * 8)          # pad batch to fill sublanes

    Xp = jnp.zeros((Bp, T), jnp.int32).at[:B].set(X)
    X_tm = jnp.transpose(Xp, (1, 0))                                  # (T, Bp)

    # fold the per-direction input projections into the embedding table:
    # emb_proj[v] = emb[v] @ [W_ih_f | W_ih_b] + (b_f | b_b)  -> (V, 8H)
    wih_fb = jnp.concatenate([params["wih_f"], params["wih_b"]], axis=1)
    b_fb = jnp.concatenate([params["b_f"], params["b_b"]], axis=1)
    emb_proj = params["emb"] @ wih_fb + b_fb                          # (V, 8H)

    gx_all = emb_proj[X_tm]                                           # (T, Bp, 8H)
    # pre-flip the backward half in time so kernel step t reads one aligned row block
    gx = jnp.concatenate([gx_all[:, :, :4 * H], gx_all[::-1, :, 4 * H:]], axis=-1)

    # block-diagonal recurrent weight -> one (Bp,2H)@(2H,8H) MXU push per timestep
    whh_bd = jnp.zeros((2 * H, 8 * H), jnp.float32)
    whh_bd = whh_bd.at[:H, :4 * H].set(params["whh_f"])
    whh_bd = whh_bd.at[H:, 4 * H:].set(params["whh_b"])

    # lane-dense slot head: pad S -> 128
    wlin_p = jnp.zeros((2 * H, S_PAD), jnp.float32).at[:, :NUM_SLOT].set(params["wlin"])
    blin_p = jnp.zeros((1, S_PAD), jnp.float32).at[:, :NUM_SLOT].set(params["blin"])

    vmem = pl.BlockSpec(memory_space=pltpu.MemorySpace.VMEM)
    logits_tm = pl.pallas_call(
        _make_kernel(T, Bp, H),
        out_shape=jax.ShapeDtypeStruct((T * Bp, S_PAD), jnp.float32),
        in_specs=[vmem] * 4,
        out_specs=vmem,
    )(gx, whh_bd, wlin_p, blin_p)

    # (T*Bp, S_PAD) -> (T, Bp, S_PAD) -> (Bp, T, S_PAD) -> (B, T, S)
    out = jnp.transpose(logits_tm.reshape(T, Bp, S_PAD), (1, 0, 2))
    return out[:B, :, :NUM_SLOT]


# --------------------------- pure-JAX reference ------------------------------
def slu_tagger_reference(X, params):
    emb = params["emb"][X]                       # (B, T, E)
    x_tm = jnp.transpose(emb, (1, 0, 2))         # (T, B, E)
    H = HIDDEN

    def run_dir(x_seq, wih, whh, b):
        def step(carry, x_t):
            h, c = carry
            g = x_t @ wih + h @ whh + b
            i = jax.nn.sigmoid(g[:, :H])
            f = jax.nn.sigmoid(g[:, H:2 * H])
            gg = jnp.tanh(g[:, 2 * H:3 * H])
            o = jax.nn.sigmoid(g[:, 3 * H:])
            c = f * c + i * gg
            h = o * jnp.tanh(c)
            return (h, c), h
        Bsz = x_seq.shape[1]
        init = (jnp.zeros((Bsz, H), jnp.float32), jnp.zeros((Bsz, H), jnp.float32))
        _, hs = lax.scan(step, init, x_seq)
        return hs                                # (T, B, H)

    hf = run_dir(x_tm, params["wih_f"], params["whh_f"], params["b_f"])
    hb = run_dir(x_tm[::-1], params["wih_b"], params["whh_b"], params["b_b"])[::-1]
    h = jnp.concatenate([hf, hb], axis=-1)       # (T, B, 2H)
    logits = h @ params["wlin"] + params["blin"]
    return jnp.transpose(logits, (1, 0, 2))


# ------------------------------ param init -----------------------------------
def init_params(key):
    ks = jax.random.split(key, 12)
    u = lambda k, shape: jax.random.uniform(k, shape, jnp.float32, -0.1, 0.1)
    params = {
        "emb":   u(ks[0], (VOCAB, EMB_DIM)),
        # forward direction (weights stored pre-transposed: x @ W)
        "wih_f": u(ks[1], (EMB_DIM, 4 * HIDDEN)),
        "whh_f": u(ks[2], (HIDDEN, 4 * HIDDEN)),
        "b_f":   u(ks[3], (1, 4 * HIDDEN)) + u(ks[4], (1, 4 * HIDDEN)),  # b_ih + b_hh
        # backward direction
        "wih_b": u(ks[5], (EMB_DIM, 4 * HIDDEN)),
        "whh_b": u(ks[6], (HIDDEN, 4 * HIDDEN)),
        "b_b":   u(ks[7], (1, 4 * HIDDEN)) + u(ks[8], (1, 4 * HIDDEN)),
        # linear slot head
        "wlin":  u(ks[9], (OUT_HIDDEN, NUM_SLOT)),
        "blin":  u(ks[10], (1, NUM_SLOT)),
    }
    return params


if __name__ == "__main__":
    key = jax.random.PRNGKey(0)
    pkey, xkey = jax.random.split(key)
    params = init_params(pkey)
    X = jax.random.randint(xkey, (BSZ, SEQ_LEN), 0, VOCAB, dtype=jnp.int32)

    pred = jax.jit(slu_tagger_forward)(X, params)
    pred = jax.block_until_ready(pred)

    ref = slu_tagger_reference(X, params)
    assert pred.shape == (BSZ, SEQ_LEN, NUM_SLOT)
    assert jnp.allclose(pred, ref, rtol=1e-3, atol=1e-3), "mismatch vs reference"

    print("KERNEL_OK")
</pallas_src>

<mosaic_0001>
module attributes {stable_mosaic.version = 11 : i64} {
  func.func @slu_tagger_kernel(%arg0: memref<8x8x256xf32, #tpu.memory_space<vmem>>, %arg1: memref<64x256xf32, #tpu.memory_space<vmem>>, %arg2: memref<64x128xf32, #tpu.memory_space<vmem>>, %arg3: memref<1x128xf32, #tpu.memory_space<vmem>>, %arg4: memref<64x128xf32, #tpu.memory_space<vmem>>) attributes {dimension_semantics = [], scalar_prefetch = 0 : i64, scratch_operands = 0 : i64, tpu.core_type = #tpu.core_type<tc>} {
    %c0 = arith.constant 0 : index
    %c0_0 = arith.constant 0 : index
    %0 = vector.load %arg1[%c0, %c0_0] : memref<64x256xf32, #tpu.memory_space<vmem>>, vector<64x256xf32>
    %cst = arith.constant 0.000000e+00 : f32
    %1 = vector.broadcast %cst : f32 to vector<8x32xf32>
    %c0_1 = arith.constant 0 : index
    %c0_2 = arith.constant 0 : index
    %c0_3 = arith.constant 0 : index
    %2 = vector.load %arg0[%c0_1, %c0_2, %c0_3] : memref<8x8x256xf32, #tpu.memory_space<vmem>>, vector<1x8x256xf32>
    %3 = vector.shape_cast %2 : vector<1x8x256xf32> to vector<8x256xf32>
    %4 = tpu.concatenate %1, %1 in 1 : vector<8x32xf32>, vector<8x32xf32> -> vector<8x64xf32>
    %cst_4 = arith.constant dense<0.000000e+00> : vector<8x256xf32>
    %5 = tpu.matmul %4, %0, %cst_4 {dimension_numbers = #tpu.dot_dimension_numbers<[1], [0], [0], [1], [0, 0, 1, 1], [], []>} : vector<8x64xf32>, vector<64x256xf32>, vector<8x256xf32> -> vector<8x256xf32>
    %6 = arith.addf %3, %5 : vector<8x256xf32>
    %7 = arith.negf %6 : vector<8x256xf32>
    %8 = math.exp %7 : vector<8x256xf32>
    %cst_5 = arith.constant 1.000000e+00 : f32
    %9 = vector.broadcast %cst_5 : f32 to vector<8x256xf32>
    %10 = arith.addf %9, %8 : vector<8x256xf32>
    %11 = arith.divf %9, %10 : vector<8x256xf32>
    %12 = math.tanh %6 : vector<8x256xf32>
    %13 = vector.extract_strided_slice %11 {offsets = [0, 0], sizes = [8, 32], strides = [1, 1]} : vector<8x256xf32> to vector<8x32xf32>
    %14 = vector.extract_strided_slice %11 {offsets = [0, 32], sizes = [8, 32], strides = [1, 1]} : vector<8x256xf32> to vector<8x32xf32>
    %15 = vector.extract_strided_slice %12 {offsets = [0, 64], sizes = [8, 32], strides = [1, 1]} : vector<8x256xf32> to vector<8x32xf32>
    %16 = vector.extract_strided_slice %11 {offsets = [0, 96], sizes = [8, 32], strides = [1, 1]} : vector<8x256xf32> to vector<8x32xf32>
    %17 = vector.extract_strided_slice %11 {offsets = [0, 128], sizes = [8, 32], strides = [1, 1]} : vector<8x256xf32> to vector<8x32xf32>
    %18 = vector.extract_strided_slice %11 {offsets = [0, 160], sizes = [8, 32], strides = [1, 1]} : vector<8x256xf32> to vector<8x32xf32>
    %19 = vector.extract_strided_slice %12 {offsets = [0, 192], sizes = [8, 32], strides = [1, 1]} : vector<8x256xf32> to vector<8x32xf32>
    %20 = vector.extract_strided_slice %11 {offsets = [0, 224], sizes = [8, 32], strides = [1, 1]} : vector<8x256xf32> to vector<8x32xf32>
    %21 = arith.mulf %14, %1 : vector<8x32xf32>
    %22 = arith.mulf %13, %15 : vector<8x32xf32>
    %23 = arith.addf %21, %22 : vector<8x32xf32>
    %24 = math.tanh %23 : vector<8x32xf32>
    %25 = arith.mulf %16, %24 : vector<8x32xf32>
    %26 = arith.mulf %18, %1 : vector<8x32xf32>
    %27 = arith.mulf %17, %19 : vector<8x32xf32>
    %28 = arith.addf %26, %27 : vector<8x32xf32>
    %29 = math.tanh %28 : vector<8x32xf32>
    %30 = arith.mulf %20, %29 : vector<8x32xf32>
    %c1 = arith.constant 1 : index
    %c0_6 = arith.constant 0 : index
    %c0_7 = arith.constant 0 : index
    %31 = vector.load %arg0[%c1, %c0_6, %c0_7] : memref<8x8x256xf32, #tpu.memory_space<vmem>>, vector<1x8x256xf32>
    %32 = vector.shape_cast %31 : vector<1x8x256xf32> to vector<8x256xf32>
    %33 = tpu.concatenate %25, %30 in 1 : vector<8x32xf32>, vector<8x32xf32> -> vector<8x64xf32>
    %cst_8 = arith.constant dense<0.000000e+00> : vector<8x256xf32>
    %34 = tpu.matmul %33, %0, %cst_8 {dimension_numbers = #tpu.dot_dimension_numbers<[1], [0], [0], [1], [0, 0, 1, 1], [], []>} : vector<8x64xf32>, vector<64x256xf32>, vector<8x256xf32> -> vector<8x256xf32>
    %35 = arith.addf %32, %34 : vector<8x256xf32>
    %36 = arith.negf %35 : vector<8x256xf32>
    %37 = math.exp %36 : vector<8x256xf32>
    %cst_9 = arith.constant 1.000000e+00 : f32
    %38 = vector.broadcast %cst_9 : f32 to vector<8x256xf32>
    %39 = arith.addf %38, %37 : vector<8x256xf32>
    %40 = arith.divf %38, %39 : vector<8x256xf32>
    %41 = math.tanh %35 : vector<8x256xf32>
    %42 = vector.extract_strided_slice %40 {offsets = [0, 0], sizes = [8, 32], strides = [1, 1]} : vector<8x256xf32> to vector<8x32xf32>
    %43 = vector.extract_strided_slice %40 {offsets = [0, 32], sizes = [8, 32], strides = [1, 1]} : vector<8x256xf32> to vector<8x32xf32>
    %44 = vector.extract_strided_slice %41 {offsets = [0, 64], sizes = [8, 32], strides = [1, 1]} : vector<8x256xf32> to vector<8x32xf32>
    %45 = vector.extract_strided_slice %40 {offsets = [0, 96], sizes = [8, 32], strides = [1, 1]} : vector<8x256xf32> to vector<8x32xf32>
    %46 = vector.extract_strided_slice %40 {offsets = [0, 128], sizes = [8, 32], strides = [1, 1]} : vector<8x256xf32> to vector<8x32xf32>
    %47 = vector.extract_strided_slice %40 {offsets = [0, 160], sizes = [8, 32], strides = [1, 1]} : vector<8x256xf32> to vector<8x32xf32>
    %48 = vector.extract_strided_slice %41 {offsets = [0, 192], sizes = [8, 32], strides = [1, 1]} : vector<8x256xf32> to vector<8x32xf32>
    %49 = vector.extract_strided_slice %40 {offsets = [0, 224], sizes = [8, 32], strides = [1, 1]} : vector<8x256xf32> to vector<8x32xf32>
    %50 = arith.mulf %43, %23 : vector<8x32xf32>
    %51 = arith.mulf %42, %44 : vector<8x32xf32>
    %52 = arith.addf %50, %51 : vector<8x32xf32>
    %53 = math.tanh %52 : vector<8x32xf32>
    %54 = arith.mulf %45, %53 : vector<8x32xf32>
    %55 = arith.mulf %47, %28 : vector<8x32xf32>
    %56 = arith.mulf %46, %48 : vector<8x32xf32>
    %57 = arith.addf %55, %56 : vector<8x32xf32>
    %58 = math.tanh %57 : vector<8x32xf32>
    %59 = arith.mulf %49, %58 : vector<8x32xf32>
    %c2 = arith.constant 2 : index
    %c0_10 = arith.constant 0 : index
    %c0_11 = arith.constant 0 : index
    %60 = vector.load %arg0[%c2, %c0_10, %c0_11] : memref<8x8x256xf32, #tpu.memory_space<vmem>>, vector<1x8x256xf32>
    %61 = vector.shape_cast %60 : vector<1x8x256xf32> to vector<8x256xf32>
    %62 = tpu.concatenate %54, %59 in 1 : vector<8x32xf32>, vector<8x32xf32> -> vector<8x64xf32>
    %cst_12 = arith.constant dense<0.000000e+00> : vector<8x256xf32>
    %63 = tpu.matmul %62, %0, %cst_12 {dimension_numbers = #tpu.dot_dimension_numbers<[1], [0], [0], [1], [0, 0, 1, 1], [], []>} : vector<8x64xf32>, vector<64x256xf32>, vector<8x256xf32> -> vector<8x256xf32>
    %64 = arith.addf %61, %63 : vector<8x256xf32>
    %65 = arith.negf %64 : vector<8x256xf32>
    %66 = math.exp %65 : vector<8x256xf32>
    %cst_13 = arith.constant 1.000000e+00 : f32
    %67 = vector.broadcast %cst_13 : f32 to vector<8x256xf32>
    %68 = arith.addf %67, %66 : vector<8x256xf32>
    %69 = arith.divf %67, %68 : vector<8x256xf32>
    %70 = math.tanh %64 : vector<8x256xf32>
    %71 = vector.extract_strided_slice %69 {offsets = [0, 0], sizes = [8, 32], strides = [1, 1]} : vector<8x256xf32> to vector<8x32xf32>
    %72 = vector.extract_strided_slice %69 {offsets = [0, 32], sizes = [8, 32], strides = [1, 1]} : vector<8x256xf32> to vector<8x32xf32>
    %73 = vector.extract_strided_slice %70 {offsets = [0, 64], sizes = [8, 32], strides = [1, 1]} : vector<8x256xf32> to vector<8x32xf32>
    %74 = vector.extract_strided_slice %69 {offsets = [0, 96], sizes = [8, 32], strides = [1, 1]} : vector<8x256xf32> to vector<8x32xf32>
    %75 = vector.extract_strided_slice %69 {offsets = [0, 128], sizes = [8, 32], strides = [1, 1]} : vector<8x256xf32> to vector<8x32xf32>
    %76 = vector.extract_strided_slice %69 {offsets = [0, 160], sizes = [8, 32], strides = [1, 1]} : vector<8x256xf32> to vector<8x32xf32>
    %77 = vector.extract_strided_slice %70 {offsets = [0, 192], sizes = [8, 32], strides = [1, 1]} : vector<8x256xf32> to vector<8x32xf32>
    %78 = vector.extract_strided_slice %69 {offsets = [0, 224], sizes = [8, 32], strides = [1, 1]} : vector<8x256xf32> to vector<8x32xf32>
    %79 = arith.mulf %72, %52 : vector<8x32xf32>
    %80 = arith.mulf %71, %73 : vector<8x32xf32>
    %81 = arith.addf %79, %80 : vector<8x32xf32>
    %82 = math.tanh %81 : vector<8x32xf32>
    %83 = arith.mulf %74, %82 : vector<8x32xf32>
    %84 = arith.mulf %76, %57 : vector<8x32xf32>
    %85 = arith.mulf %75, %77 : vector<8x32xf32>
    %86 = arith.addf %84, %85 : vector<8x32xf32>
    %87 = math.tanh %86 : vector<8x32xf32>
    %88 = arith.mulf %78, %87 : vector<8x32xf32>
    %c3 = arith.constant 3 : index
    %c0_14 = arith.constant 0 : index
    %c0_15 = arith.constant 0 : index
    %89 = vector.load %arg0[%c3, %c0_14, %c0_15] : memref<8x8x256xf32, #tpu.memory_space<vmem>>, vector<1x8x256xf32>
    %90 = vector.shape_cast %89 : vector<1x8x256xf32> to vector<8x256xf32>
    %91 = tpu.concatenate %83, %88 in 1 : vector<8x32xf32>, vector<8x32xf32> -> vector<8x64xf32>
    %cst_16 = arith.constant dense<0.000000e+00> : vector<8x256xf32>
    %92 = tpu.matmul %91, %0, %cst_16 {dimension_numbers = #tpu.dot_dimension_numbers<[1], [0], [0], [1], [0, 0, 1, 1], [], []>} : vector<8x64xf32>, vector<64x256xf32>, vector<8x256xf32> -> vector<8x256xf32>
    %93 = arith.addf %90, %92 : vector<8x256xf32>
    %94 = arith.negf %93 : vector<8x256xf32>
    %95 = math.exp %94 : vector<8x256xf32>
    %cst_17 = arith.constant 1.000000e+00 : f32
    %96 = vector.broadcast %cst_17 : f32 to vector<8x256xf32>
    %97 = arith.addf %96, %95 : vector<8x256xf32>
    %98 = arith.divf %96, %97 : vector<8x256xf32>
    %99 = math.tanh %93 : vector<8x256xf32>
    %100 = vector.extract_strided_slice %98 {offsets = [0, 0], sizes = [8, 32], strides = [1, 1]} : vector<8x256xf32> to vector<8x32xf32>
    %101 = vector.extract_strided_slice %98 {offsets = [0, 32], sizes = [8, 32], strides = [1, 1]} : vector<8x256xf32> to vector<8x32xf32>
    %102 = vector.extract_strided_slice %99 {offsets = [0, 64], sizes = [8, 32], strides = [1, 1]} : vector<8x256xf32> to vector<8x32xf32>
    %103 = vector.extract_strided_slice %98 {offsets = [0, 96], sizes = [8, 32], strides = [1, 1]} : vector<8x256xf32> to vector<8x32xf32>
    %104 = vector.extract_strided_slice %98 {offsets = [0, 128], sizes = [8, 32], strides = [1, 1]} : vector<8x256xf32> to vector<8x32xf32>
    %105 = vector.extract_strided_slice %98 {offsets = [0, 160], sizes = [8, 32], strides = [1, 1]} : vector<8x256xf32> to vector<8x32xf32>
    %106 = vector.extract_strided_slice %99 {offsets = [0, 192], sizes = [8, 32], strides = [1, 1]} : vector<8x256xf32> to vector<8x32xf32>
    %107 = vector.extract_strided_slice %98 {offsets = [0, 224], sizes = [8, 32], strides = [1, 1]} : vector<8x256xf32> to vector<8x32xf32>
    %108 = arith.mulf %101, %81 : vector<8x32xf32>
    %109 = arith.mulf %100, %102 : vector<8x32xf32>
    %110 = arith.addf %108, %109 : vector<8x32xf32>
    %111 = math.tanh %110 : vector<8x32xf32>
    %112 = arith.mulf %103, %111 : vector<8x32xf32>
    %113 = arith.mulf %105, %86 : vector<8x32xf32>
    %114 = arith.mulf %104, %106 : vector<8x32xf32>
    %115 = arith.addf %113, %114 : vector<8x32xf32>
    %116 = math.tanh %115 : vector<8x32xf32>
    %117 = arith.mulf %107, %116 : vector<8x32xf32>
    %c4 = arith.constant 4 : index
    %c0_18 = arith.constant 0 : index
    %c0_19 = arith.constant 0 : index
    %118 = vector.load %arg0[%c4, %c0_18, %c0_19] : memref<8x8x256xf32, #tpu.memory_space<vmem>>, vector<1x8x256xf32>
    %119 = vector.shape_cast %118 : vector<1x8x256xf32> to vector<8x256xf32>
    %120 = tpu.concatenate %112, %117 in 1 : vector<8x32xf32>, vector<8x32xf32> -> vector<8x64xf32>
    %cst_20 = arith.constant dense<0.000000e+00> : vector<8x256xf32>
    %121 = tpu.matmul %120, %0, %cst_20 {dimension_numbers = #tpu.dot_dimension_numbers<[1], [0], [0], [1], [0, 0, 1, 1], [], []>} : vector<8x64xf32>, vector<64x256xf32>, vector<8x256xf32> -> vector<8x256xf32>
    %122 = arith.addf %119, %121 : vector<8x256xf32>
    %123 = arith.negf %122 : vector<8x256xf32>
    %124 = math.exp %123 : vector<8x256xf32>
    %cst_21 = arith.constant 1.000000e+00 : f32
    %125 = vector.broadcast %cst_21 : f32 to vector<8x256xf32>
    %126 = arith.addf %125, %124 : vector<8x256xf32>
    %127 = arith.divf %125, %126 : vector<8x256xf32>
    %128 = math.tanh %122 : vector<8x256xf32>
    %129 = vector.extract_strided_slice %127 {offsets = [0, 0], sizes = [8, 32], strides = [1, 1]} : vector<8x256xf32> to vector<8x32xf32>
    %130 = vector.extract_strided_slice %127 {offsets = [0, 32], sizes = [8, 32], strides = [1, 1]} : vector<8x256xf32> to vector<8x32xf32>
    %131 = vector.extract_strided_slice %128 {offsets = [0, 64], sizes = [8, 32], strides = [1, 1]} : vector<8x256xf32> to vector<8x32xf32>
    %132 = vector.extract_strided_slice %127 {offsets = [0, 96], sizes = [8, 32], strides = [1, 1]} : vector<8x256xf32> to vector<8x32xf32>
    %133 = vector.extract_strided_slice %127 {offsets = [0, 128], sizes = [8, 32], strides = [1, 1]} : vector<8x256xf32> to vector<8x32xf32>
    %134 = vector.extract_strided_slice %127 {offsets = [0, 160], sizes = [8, 32], strides = [1, 1]} : vector<8x256xf32> to vector<8x32xf32>
    %135 = vector.extract_strided_slice %128 {offsets = [0, 192], sizes = [8, 32], strides = [1, 1]} : vector<8x256xf32> to vector<8x32xf32>
    %136 = vector.extract_strided_slice %127 {offsets = [0, 224], sizes = [8, 32], strides = [1, 1]} : vector<8x256xf32> to vector<8x32xf32>
    %137 = arith.mulf %130, %110 : vector<8x32xf32>
    %138 = arith.mulf %129, %131 : vector<8x32xf32>
    %139 = arith.addf %137, %138 : vector<8x32xf32>
    %140 = math.tanh %139 : vector<8x32xf32>
    %141 = arith.mulf %132, %140 : vector<8x32xf32>
    %142 = arith.mulf %134, %115 : vector<8x32xf32>
    %143 = arith.mulf %133, %135 : vector<8x32xf32>
    %144 = arith.addf %142, %143 : vector<8x32xf32>
    %145 = math.tanh %144 : vector<8x32xf32>
    %146 = arith.mulf %136, %145 : vector<8x32xf32>
    %c5 = arith.constant 5 : index
    %c0_22 = arith.constant 0 : index
    %c0_23 = arith.constant 0 : index
    %147 = vector.load %arg0[%c5, %c0_22, %c0_23] : memref<8x8x256xf32, #tpu.memory_space<vmem>>, vector<1x8x256xf32>
    %148 = vector.shape_cast %147 : vector<1x8x256xf32> to vector<8x256xf32>
    %149 = tpu.concatenate %141, %146 in 1 : vector<8x32xf32>, vector<8x32xf32> -> vector<8x64xf32>
    %cst_24 = arith.constant dense<0.000000e+00> : vector<8x256xf32>
    %150 = tpu.matmul %149, %0, %cst_24 {dimension_numbers = #tpu.dot_dimension_numbers<[1], [0], [0], [1], [0, 0, 1, 1], [], []>} : vector<8x64xf32>, vector<64x256xf32>, vector<8x256xf32> -> vector<8x256xf32>
    %151 = arith.addf %148, %150 : vector<8x256xf32>
    %152 = arith.negf %151 : vector<8x256xf32>
    %153 = math.exp %152 : vector<8x256xf32>
    %cst_25 = arith.constant 1.000000e+00 : f32
    %154 = vector.broadcast %cst_25 : f32 to vector<8x256xf32>
    %155 = arith.addf %154, %153 : vector<8x256xf32>
    %156 = arith.divf %154, %155 : vector<8x256xf32>
    %157 = math.tanh %151 : vector<8x256xf32>
    %158 = vector.extract_strided_slice %156 {offsets = [0, 0], sizes = [8, 32], strides = [1, 1]} : vector<8x256xf32> to vector<8x32xf32>
    %159 = vector.extract_strided_slice %156 {offsets = [0, 32], sizes = [8, 32], strides = [1, 1]} : vector<8x256xf32> to vector<8x32xf32>
    %160 = vector.extract_strided_slice %157 {offsets = [0, 64], sizes = [8, 32], strides = [1, 1]} : vector<8x256xf32> to vector<8x32xf32>
    %161 = vector.extract_strided_slice %156 {offsets = [0, 96], sizes = [8, 32], strides = [1, 1]} : vector<8x256xf32> to vector<8x32xf32>
    %162 = vector.extract_strided_slice %156 {offsets = [0, 128], sizes = [8, 32], strides = [1, 1]} : vector<8x256xf32> to vector<8x32xf32>
    %163 = vector.extract_strided_slice %156 {offsets = [0, 160], sizes = [8, 32], strides = [1, 1]} : vector<8x256xf32> to vector<8x32xf32>
    %164 = vector.extract_strided_slice %157 {offsets = [0, 192], sizes = [8, 32], strides = [1, 1]} : vector<8x256xf32> to vector<8x32xf32>
    %165 = vector.extract_strided_slice %156 {offsets = [0, 224], sizes = [8, 32], strides = [1, 1]} : vector<8x256xf32> to vector<8x32xf32>
    %166 = arith.mulf %159, %139 : vector<8x32xf32>
    %167 = arith.mulf %158, %160 : vector<8x32xf32>
    %168 = arith.addf %166, %167 : vector<8x32xf32>
    %169 = math.tanh %168 : vector<8x32xf32>
    %170 = arith.mulf %161, %169 : vector<8x32xf32>
    %171 = arith.mulf %163, %144 : vector<8x32xf32>
    %172 = arith.mulf %162, %164 : vector<8x32xf32>
    %173 = arith.addf %171, %172 : vector<8x32xf32>
    %174 = math.tanh %173 : vector<8x32xf32>
    %175 = arith.mulf %165, %174 : vector<8x32xf32>
    %c6 = arith.constant 6 : index
    %c0_26 = arith.constant 0 : index
    %c0_27 = arith.constant 0 : index
    %176 = vector.load %arg0[%c6, %c0_26, %c0_27] : memref<8x8x256xf32, #tpu.memory_space<vmem>>, vector<1x8x256xf32>
    %177 = vector.shape_cast %176 : vector<1x8x256xf32> to vector<8x256xf32>
    %178 = tpu.concatenate %170, %175 in 1 : vector<8x32xf32>, vector<8x32xf32> -> vector<8x64xf32>
    %cst_28 = arith.constant dense<0.000000e+00> : vector<8x256xf32>
    %179 = tpu.matmul %178, %0, %cst_28 {dimension_numbers = #tpu.dot_dimension_numbers<[1], [0], [0], [1], [0, 0, 1, 1], [], []>} : vector<8x64xf32>, vector<64x256xf32>, vector<8x256xf32> -> vector<8x256xf32>
    %180 = arith.addf %177, %179 : vector<8x256xf32>
    %181 = arith.negf %180 : vector<8x256xf32>
    %182 = math.exp %181 : vector<8x256xf32>
    %cst_29 = arith.constant 1.000000e+00 : f32
    %183 = vector.broadcast %cst_29 : f32 to vector<8x256xf32>
    %184 = arith.addf %183, %182 : vector<8x256xf32>
    %185 = arith.divf %183, %184 : vector<8x256xf32>
    %186 = math.tanh %180 : vector<8x256xf32>
    %187 = vector.extract_strided_slice %185 {offsets = [0, 0], sizes = [8, 32], strides = [1, 1]} : vector<8x256xf32> to vector<8x32xf32>
    %188 = vector.extract_strided_slice %185 {offsets = [0, 32], sizes = [8, 32], strides = [1, 1]} : vector<8x256xf32> to vector<8x32xf32>
    %189 = vector.extract_strided_slice %186 {offsets = [0, 64], sizes = [8, 32], strides = [1, 1]} : vector<8x256xf32> to vector<8x32xf32>
    %190 = vector.extract_strided_slice %185 {offsets = [0, 96], sizes = [8, 32], strides = [1, 1]} : vector<8x256xf32> to vector<8x32xf32>
    %191 = vector.extract_strided_slice %185 {offsets = [0, 128], sizes = [8, 32], strides = [1, 1]} : vector<8x256xf32> to vector<8x32xf32>
    %192 = vector.extract_strided_slice %185 {offsets = [0, 160], sizes = [8, 32], strides = [1, 1]} : vector<8x256xf32> to vector<8x32xf32>
    %193 = vector.extract_strided_slice %186 {offsets = [0, 192], sizes = [8, 32], strides = [1, 1]} : vector<8x256xf32> to vector<8x32xf32>
    %194 = vector.extract_strided_slice %185 {offsets = [0, 224], sizes = [8, 32], strides = [1, 1]} : vector<8x256xf32> to vector<8x32xf32>
    %195 = arith.mulf %188, %168 : vector<8x32xf32>
    %196 = arith.mulf %187, %189 : vector<8x32xf32>
    %197 = arith.addf %195, %196 : vector<8x32xf32>
    %198 = math.tanh %197 : vector<8x32xf32>
    %199 = arith.mulf %190, %198 : vector<8x32xf32>
    %200 = arith.mulf %192, %173 : vector<8x32xf32>
    %201 = arith.mulf %191, %193 : vector<8x32xf32>
    %202 = arith.addf %200, %201 : vector<8x32xf32>
    %203 = math.tanh %202 : vector<8x32xf32>
    %204 = arith.mulf %194, %203 : vector<8x32xf32>
    %c7 = arith.constant 7 : index
    %c0_30 = arith.constant 0 : index
    %c0_31 = arith.constant 0 : index
    %205 = vector.load %arg0[%c7, %c0_30, %c0_31] : memref<8x8x256xf32, #tpu.memory_space<vmem>>, vector<1x8x256xf32>
    %206 = vector.shape_cast %205 : vector<1x8x256xf32> to vector<8x256xf32>
    %207 = tpu.concatenate %199, %204 in 1 : vector<8x32xf32>, vector<8x32xf32> -> vector<8x64xf32>
    %cst_32 = arith.constant dense<0.000000e+00> : vector<8x256xf32>
    %208 = tpu.matmul %207, %0, %cst_32 {dimension_numbers = #tpu.dot_dimension_numbers<[1], [0], [0], [1], [0, 0, 1, 1], [], []>} : vector<8x64xf32>, vector<64x256xf32>, vector<8x256xf32> -> vector<8x256xf32>
    %209 = arith.addf %206, %208 : vector<8x256xf32>
    %210 = arith.negf %209 : vector<8x256xf32>
    %211 = math.exp %210 : vector<8x256xf32>
    %cst_33 = arith.constant 1.000000e+00 : f32
    %212 = vector.broadcast %cst_33 : f32 to vector<8x256xf32>
    %213 = arith.addf %212, %211 : vector<8x256xf32>
    %214 = arith.divf %212, %213 : vector<8x256xf32>
    %215 = math.tanh %209 : vector<8x256xf32>
    %216 = vector.extract_strided_slice %214 {offsets = [0, 0], sizes = [8, 32], strides = [1, 1]} : vector<8x256xf32> to vector<8x32xf32>
    %217 = vector.extract_strided_slice %214 {offsets = [0, 32], sizes = [8, 32], strides = [1, 1]} : vector<8x256xf32> to vector<8x32xf32>
    %218 = vector.extract_strided_slice %215 {offsets = [0, 64], sizes = [8, 32], strides = [1, 1]} : vector<8x256xf32> to vector<8x32xf32>
    %219 = vector.extract_strided_slice %214 {offsets = [0, 96], sizes = [8, 32], strides = [1, 1]} : vector<8x256xf32> to vector<8x32xf32>
    %220 = vector.extract_strided_slice %214 {offsets = [0, 128], sizes = [8, 32], strides = [1, 1]} : vector<8x256xf32> to vector<8x32xf32>
    %221 = vector.extract_strided_slice %214 {offsets = [0, 160], sizes = [8, 32], strides = [1, 1]} : vector<8x256xf32> to vector<8x32xf32>
    %222 = vector.extract_strided_slice %215 {offsets = [0, 192], sizes = [8, 32], strides = [1, 1]} : vector<8x256xf32> to vector<8x32xf32>
    %223 = vector.extract_strided_slice %214 {offsets = [0, 224], sizes = [8, 32], strides = [1, 1]} : vector<8x256xf32> to vector<8x32xf32>
    %224 = arith.mulf %217, %197 : vector<8x32xf32>
    %225 = arith.mulf %216, %218 : vector<8x32xf32>
    %226 = arith.addf %224, %225 : vector<8x32xf32>
    %227 = math.tanh %226 : vector<8x32xf32>
    %228 = arith.mulf %219, %227 : vector<8x32xf32>
    %229 = arith.mulf %221, %202 : vector<8x32xf32>
    %230 = arith.mulf %220, %222 : vector<8x32xf32>
    %231 = arith.addf %229, %230 : vector<8x32xf32>
    %232 = math.tanh %231 : vector<8x32xf32>
    %233 = arith.mulf %223, %232 : vector<8x32xf32>
    %234 = tpu.concatenate %25, %54, %83, %112, %141, %170, %199, %228 in 0 : vector<8x32xf32>, vector<8x32xf32>, vector<8x32xf32>, vector<8x32xf32>, vector<8x32xf32>, vector<8x32xf32>, vector<8x32xf32>, vector<8x32xf32> -> vector<64x32xf32>
    %235 = tpu.concatenate %233, %204, %175, %146, %117, %88, %59, %30 in 0 : vector<8x32xf32>, vector<8x32xf32>, vector<8x32xf32>, vector<8x32xf32>, vector<8x32xf32>, vector<8x32xf32>, vector<8x32xf32>, vector<8x32xf32> -> vector<64x32xf32>
    %c0_34 = arith.constant 0 : index
    %c0_35 = arith.constant 0 : index
    %236 = vector.load %arg2[%c0_34, %c0_35] : memref<64x128xf32, #tpu.memory_space<vmem>>, vector<64x128xf32>
    %237 = vector.extract_strided_slice %236 {offsets = [0, 0], sizes = [32, 128], strides = [1, 1]} : vector<64x128xf32> to vector<32x128xf32>
    %cst_36 = arith.constant dense<0.000000e+00> : vector<64x128xf32>
    %238 = tpu.matmul %234, %237, %cst_36 {dimension_numbers = #tpu.dot_dimension_numbers<[1], [0], [0], [1], [0, 0, 1, 1], [], []>} : vector<64x32xf32>, vector<32x128xf32>, vector<64x128xf32> -> vector<64x128xf32>
    %239 = vector.extract_strided_slice %236 {offsets = [32, 0], sizes = [32, 128], strides = [1, 1]} : vector<64x128xf32> to vector<32x128xf32>
    %cst_37 = arith.constant dense<0.000000e+00> : vector<64x128xf32>
    %240 = tpu.matmul %235, %239, %cst_37 {dimension_numbers = #tpu.dot_dimension_numbers<[1], [0], [0], [1], [0, 0, 1, 1], [], []>} : vector<64x32xf32>, vector<32x128xf32>, vector<64x128xf32> -> vector<64x128xf32>
    %241 = arith.addf %238, %240 : vector<64x128xf32>
    %c0_38 = arith.constant 0 : index
    %c0_39 = arith.constant 0 : index
    %242 = vector.load %arg3[%c0_38, %c0_39] : memref<1x128xf32, #tpu.memory_space<vmem>>, vector<1x128xf32>
    %243 = vector.broadcast %242 : vector<1x128xf32> to vector<64x128xf32>
    %244 = arith.addf %241, %243 : vector<64x128xf32>
    %c0_40 = arith.constant 0 : index
    %c0_41 = arith.constant 0 : index
    %245 = vector.load %arg4[%c0_40, %c0_41] : memref<64x128xf32, #tpu.memory_space<vmem>>, vector<64x128xf32>
    tpu.vector_store %arg4[%c0_40, %c0_41], %244 {strides = array<i32>} : memref<64x128xf32, #tpu.memory_space<vmem>>, vector<64x128xf32>,
    return
  }
}

</mosaic_0001>

<llo_original>
// kernel: slu_tagger_forward.1
$region0: #{slu_tagger_forward.1}
  #allocation0 [shape = 'u32[]', space=smem, size = 0x4, offset = 0x4, fixed_abs, tag = 'smem constant byte address 0x4 - core index']
  #allocation1 [shape = 'u32[144,128]{1,0:T(1,128)}', space=vmem, size = 0x12000, scoped, tag = 'internal scratch']
  %s0 = inlined_call_operand.vmem [shape: f32[8,8,256], index: 0, kind: input, shape index: {}]
  %s1 = inlined_call_operand.vmem [shape: f32[64,256], index: 1, kind: input, shape index: {}]
  %s2 = inlined_call_operand.vmem [shape: f32[64,128], index: 2, kind: input, shape index: {}]
  %s3 = inlined_call_operand.vmem [shape: f32[1,128], index: 3, kind: input, shape index: {}]
  %s4 = inlined_call_operand.vmem [shape: f32[64,128], index: 4, kind: output, shape index: {}]
  %s5 = sld [smem:[#allocation0]]
  $region26: #{slu_tagger_forward.1} parent=0
    _
  %s7 = ssub.s32 1, %s5
  %s8 = scalar_select 0, %s7, %s5
  // Predicated region
  $region2: #{slu_tagger_forward.1} parent=0 // pred_check
    _
  $region3: #{slu_tagger_forward.1} parent=0 // pred_check_branch
    %10 = sbr.rel (0) target = $region5
  $region4: #{slu_tagger_forward.1} parent=0 // pred_region
    _
  $region5: #{slu_tagger_forward.1} parent=0 // pred_fallthru
    _
  // Predicated region
  $region6: #{slu_tagger_forward.1} parent=0 // pred_check
    _
  $region7: #{slu_tagger_forward.1} parent=0 // pred_check_branch
    %12 = sbr.rel (0) target = $region9
  $region8: #{slu_tagger_forward.1} parent=0 // pred_region
    _
  $region9: #{slu_tagger_forward.1} parent=0 // pred_fallthru
    _
  // Predicated region
  $region10: #{slu_tagger_forward.1} parent=0 // pred_check
    _
  $region11: #{slu_tagger_forward.1} parent=0 // pred_check_branch
    %14 = sbr.rel (0) target = $region13
  $region12: #{slu_tagger_forward.1} parent=0 // pred_region
    _
  $region13: #{slu_tagger_forward.1} parent=0 // pred_fallthru
    _
  // Predicated region
  $region14: #{slu_tagger_forward.1} parent=0 // pred_check
    _
  $region15: #{slu_tagger_forward.1} parent=0 // pred_check_branch
    %16 = sbr.rel (0) target = $region17
  $region16: #{slu_tagger_forward.1} parent=0 // pred_region
    _
  $region17: #{slu_tagger_forward.1} parent=0 // pred_fallthru
    _
  %v17 = vld [vmem:[%s1] sm:$0xff]
  %v18 = vld [vmem:[%s1 + $0x8] sm:$0xff]
  %v19 = vld [vmem:[%s1 + $0x10] sm:$0xff]
  %v20 = vld [vmem:[%s1 + $0x18] sm:$0xff]
  %v21 = vld [vmem:[%s1 + $0x20] sm:$0xff]
  %v22 = vld [vmem:[%s1 + $0x28] sm:$0xff]
  %v23 = vld [vmem:[%s1 + $0x30] sm:$0xff]
  %v24 = vld [vmem:[%s1 + $0x38] sm:$0xff]
  %v25 = vld [vmem:[%s1 + $0x40] sm:$0xff]
  %v26 = vld [vmem:[%s1 + $0x48] sm:$0xff]
  %v27 = vld [vmem:[%s1 + $0x50] sm:$0xff]
  %v28 = vld [vmem:[%s1 + $0x58] sm:$0xff]
  %v29 = vld [vmem:[%s1 + $0x60] sm:$0xff]
  %v30 = vld [vmem:[%s1 + $0x68] sm:$0xff]
  %v31 = vld [vmem:[%s1 + $0x70] sm:$0xff]
  %v32 = vld [vmem:[%s1 + $0x78] sm:$0xff]
  %v33 = vld [vmem:[%s0] sm:$0xff]
  %v34 = vld [vmem:[%s0 + $0x8] sm:$0xff]
  %vm35 = vcmask 523264
  %v37 = vsel %vm35, 0.0, 0
  %39 = vmatprep.subr.mxu0 %v18
  %40 = vmatpush1.msra.mxu0 %v17
  %41 = vmatprep.subr.mxu0 %v20
  %42 = vmatpush1.msra.mxu0 %v19
  %43 = vmatprep.subr.mxu0 %v22
  %44 = vmatpush1.msra.mxu0 %v21
  %45 = vmatprep.subr.mxu0 %v24
  %46 = vmatpush1.msra.mxu0 %v23
  %47 = vmatprep.subr.mxu0 %v26
  %48 = vmatpush1.msra.mxu0 %v25
  %49 = vmatprep.subr.mxu0 %v28
  %50 = vmatpush1.msra.mxu0 %v27
  %51 = vmatprep.subr.mxu0 %v30
  %52 = vmatpush1.msra.mxu0 %v29
  %53 = vmatprep.subr.mxu0 %v32
  %54 = vmatpush1.msra.mxu0 %v31
  %55 = vmatprep.subr.mxu0 0.0
  %56 = vmatpush1.msra.mxu0 0.0
  %57 = vmatprep.subr.mxu0 0.0
  %58 = vmatpush1.msra.mxu0 0.0
  %59 = vmatprep.subr.mxu0 0.0
  %60 = vmatpush1.msra.mxu0 0.0
  %61 = vmatprep.subr.mxu0 0.0
  %62 = vmatpush1.msra.mxu0 0.0
  %63 = vmatprep.subr.mxu0 0.0
  %64 = vmatpush1.msra.mxu0 0.0
  %65 = vmatprep.subr.mxu0 0.0
  %66 = vmatpush1.msra.mxu0 0.0
  %67 = vmatprep.subr.mxu0 0.0
  %68 = vmatpush1.msra.mxu0 0.0
  %69 = vmatprep.subr.mxu0 0.0
  %70 = vmatpush1.msra.mxu0 0.0
  %71 = vmatprep.subr.mxu0 0.0
  %72 = vmatpush1.msra.mxu0 0.0
  %73 = vmatprep.subr.mxu0 0.0
  %74 = vmatpush1.msra.mxu0 0.0
  %75 = vmatprep.subr.mxu0 0.0
  %76 = vmatpush1.msra.mxu0 0.0
  %77 = vmatprep.subr.mxu0 0.0
  %78 = vmatpush1.msra.mxu0 0.0
  %79 = vmatprep.subr.mxu0 0.0
  %80 = vmatpush1.msra.mxu0 0.0
  %81 = vmatprep.subr.mxu0 0.0
  %82 = vmatpush1.msra.mxu0 0.0
  %83 = vmatprep.subr.mxu0 0.0
  %84 = vmatpush1.msra.mxu0 0.0
  %85 = vmatprep.subr.mxu0 0.0
  %86 = vmatpush1.msra.mxu0 0.0
  %87 = vmatprep.subr.mxu0 0.0
  %88 = vmatpush1.msra.mxu0 0.0
  %89 = vmatprep.subr.mxu0 0.0
  %90 = vmatpush1.msra.mxu0 0.0
  %91 = vmatprep.subr.mxu0 0.0
  %92 = vmatpush1.msra.mxu0 0.0
  %93 = vmatprep.subr.mxu0 0.0
  %94 = vmatpush1.msra.mxu0 0.0
  %95 = vmatprep.subr.mxu0 0.0
  %96 = vmatpush1.msra.mxu0 0.0
  %97 = vmatprep.subr.mxu0 0.0
  %98 = vmatpush1.msra.mxu0 0.0
  %99 = vmatprep.subr.mxu0 0.0
  %100 = vmatpush1.msra.mxu0 0.0
  %101 = vmatprep.subr.mxu0 0.0
  %102 = vmatpush1.msra.mxu0 0.0
  %103 = vmatprep.mubr.f32.mxu0 0.0
  %104 = vmatmul.mubr.f32.gmra.mrb[0].mxu0 %v37
  %v105 = vpop.f32.mrb[0].mxu0
  %v106 = vadd.f32 0.0, %v105
  %v107 = vpop.f32.mrb[0].mxu0
  %v108 = vadd.f32 0.0, %v107
  %109 = vdwg.mxu0
  %v110 = vadd.f32 %v33, %v106
  %v111 = vadd.f32 %v34, %v108
  %v112 = vxor.u32 %v110, 2147483648
  %v113 = vxor.u32 %v111, 2147483648
  %v114 = vmul.f32 %v112, 1.442695
  %v115 = vpow.pop %v114
  %v116 = vmul.f32 %v113, 1.442695
  %v117 = vpow.pop %v116
  %v118 = vadd.f32 %v115, 1.0
  %v119 = vadd.f32 %v117, 1.0
  %v120 = vrcp.pop %v118
  %v121 = vmul.f32 1.0, %v120
  %v122 = vrcp.pop %v119
  %v123 = vmul.f32 1.0, %v122
  %v124 = vtanh.pop %v110
  %v125 = vtanh.pop %v111
  %v126 = vmul.f32 %v121, 0.0
  %128 = vrot.lane.b32.xlu0 %v124, 64
  %v129 = vpop.permute.xlu0 %128
  %v131 = vmul.f32 %v121, %v129
  %133 = vrot.lane.b32.xlu0 %v131, 32
  %v134 = vpop.permute.xlu0 %133
  %v136 = vadd.f32 %v126, %v134
  %v137 = vtanh.pop %v136
  %139 = vrot.lane.b32.xlu0 %v137, 64
  %v140 = vpop.permute.xlu0 %139
  %v142 = vmul.f32 %v121, %v140
  %v143 = vmul.f32 %v123, 0.0
  %145 = vrot.lane.b32.xlu0 %v125, 64
  %v146 = vpop.permute.xlu0 %145
  %v148 = vmul.f32 %v123, %v146
  %150 = vrot.lane.b32.xlu0 %v148, 32
  %v151 = vpop.permute.xlu0 %150
  %v153 = vadd.f32 %v143, %v151
  %v154 = vtanh.pop %v153
  %156 = vrot.lane.b32.xlu0 %v154, 64
  %v157 = vpop.permute.xlu0 %156
  %v159 = vmul.f32 %v123, %v157
  %s160 = scalar_lea.vmem %s0, 16
  %v161 = vld [vmem:[%s160] sm:$0xff]
  %v162 = vld [vmem:[%s160 + $0x8] sm:$0xff]
  %164 = vrot.lane.b32.xlu0 %v142, 32
  %v165 = vpop.permute.xlu0 %164
  %168 = vrot.lane.b32.xlu0 %v159, 64
  %v169 = vpop.permute.xlu0 %168
  %vm171 = vcmask 261120
  %v172 = vsel %vm171, %v165, %v169
  %v174 = vsel %vm35, %v172, 0
  %176 = vmatprep.subr.mxu0 %v18
  %177 = vmatpush1.msra.mxu0 %v17
  %178 = vmatprep.subr.mxu0 %v20
  %179 = vmatpush1.msra.mxu0 %v19
  %180 = vmatprep.subr.mxu0 %v22
  %181 = vmatpush1.msra.mxu0 %v21
  %182 = vmatprep.subr.mxu0 %v24
  %183 = vmatpush1.msra.mxu0 %v23
  %184 = vmatprep.subr.mxu0 %v26
  %185 = vmatpush1.msra.mxu0 %v25
  %186 = vmatprep.subr.mxu0 %v28
  %187 = vmatpush1.msra.mxu0 %v27
  %188 = vmatprep.subr.mxu0 %v30
  %189 = vmatpush1.msra.mxu0 %v29
  %190 = vmatprep.subr.mxu0 %v32
  %191 = vmatpush1.msra.mxu0 %v31
  %192 = vmatprep.subr.mxu0 0.0
  %193 = vmatpush1.msra.mxu0 0.0
  %194 = vmatprep.subr.mxu0 0.0
  %195 = vmatpush1.msra.mxu0 0.0
  %196 = vmatprep.subr.mxu0 0.0
  %197 = vmatpush1.msra.mxu0 0.0
  %198 = vmatprep.subr.mxu0 0.0
  %199 = vmatpush1.msra.mxu0 0.0
  %200 = vmatprep.subr.mxu0 0.0
  %201 = vmatpush1.msra.mxu0 0.0
  %202 = vmatprep.subr.mxu0 0.0
  %203 = vmatpush1.msra.mxu0 0.0
  %204 = vmatprep.subr.mxu0 0.0
  %205 = vmatpush1.msra.mxu0 0.0
  %206 = vmatprep.subr.mxu0 0.0
  %207 = vmatpush1.msra.mxu0 0.0
  %208 = vmatprep.subr.mxu0 0.0
  %209 = vmatpush1.msra.mxu0 0.0
  %210 = vmatprep.subr.mxu0 0.0
  %211 = vmatpush1.msra.mxu0 0.0
  %212 = vmatprep.subr.mxu0 0.0
  %213 = vmatpush1.msra.mxu0 0.0
  %214 = vmatprep.subr.mxu0 0.0
  %215 = vmatpush1.msra.mxu0 0.0
  %216 = vmatprep.subr.mxu0 0.0
  %217 = vmatpush1.msra.mxu0 0.0
  %218 = vmatprep.subr.mxu0 0.0
  %219 = vmatpush1.msra.mxu0 0.0
  %220 = vmatprep.subr.mxu0 0.0
  %221 = vmatpush1.msra.mxu0 0.0
  %222 = vmatprep.subr.mxu0 0.0
  %223 = vmatpush1.msra.mxu0 0.0
  %224 = vmatprep.subr.mxu0 0.0
  %225 = vmatpush1.msra.mxu0 0.0
  %226 = vmatprep.subr.mxu0 0.0
  %227 = vmatpush1.msra.mxu0 0.0
  %228 = vmatprep.subr.mxu0 0.0
  %229 = vmatpush1.msra.mxu0 0.0
  %230 = vmatprep.subr.mxu0 0.0
  %231 = vmatpush1.msra.mxu0 0.0
  %232 = vmatprep.subr.mxu0 0.0
  %233 = vmatpush1.msra.mxu0 0.0
  %234 = vmatprep.subr.mxu0 0.0
  %235 = vmatpush1.msra.mxu0 0.0
  %236 = vmatprep.subr.mxu0 0.0
  %237 = vmatpush1.msra.mxu0 0.0
  %238 = vmatprep.subr.mxu0 0.0
  %239 = vmatpush1.msra.mxu0 0.0
  %240 = vmatprep.mubr.f32.mxu0 0.0
  %241 = vmatmul.mubr.f32.gmra.mrb[0].mxu0 %v174
  %v242 = vpop.f32.mrb[0].mxu0
  %v243 = vadd.f32 0.0, %v242
  %v244 = vpop.f32.mrb[0].mxu0
  %v245 = vadd.f32 0.0, %v244
  %246 = vdwg.mxu0
  %v247 = vadd.f32 %v161, %v243
  %v248 = vadd.f32 %v162, %v245
  %v249 = vxor.u32 %v247, 2147483648
  %v250 = vxor.u32 %v248, 2147483648
  %v251 = vmul.f32 %v249, 1.442695
  %v252 = vpow.pop %v251
  %v253 = vmul.f32 %v250, 1.442695
  %v254 = vpow.pop %v253
  %v255 = vadd.f32 %v252, 1.0
  %v256 = vadd.f32 %v254, 1.0
  %v257 = vrcp.pop %v255
  %v258 = vmul.f32 1.0, %v257
  %v259 = vrcp.pop %v256
  %v260 = vmul.f32 1.0, %v259
  %v261 = vtanh.pop %v247
  %v262 = vtanh.pop %v248
  %v263 = vmul.f32 %v258, %v136
  %265 = vrot.lane.b32.xlu0 %v261, 64
  %v266 = vpop.permute.xlu0 %265
  %v268 = vmul.f32 %v258, %v266
  %270 = vrot.lane.b32.xlu0 %v268, 32
  %v271 = vpop.permute.xlu0 %270
  %v273 = vadd.f32 %v263, %v271
  %v274 = vtanh.pop %v273
  %276 = vrot.lane.b32.xlu0 %v274, 64
  %v277 = vpop.permute.xlu0 %276
  %v279 = vmul.f32 %v258, %v277
  %v280 = vmul.f32 %v260, %v153
  %282 = vrot.lane.b32.xlu0 %v262, 64
  %v283 = vpop.permute.xlu0 %282
  %v285 = vmul.f32 %v260, %v283
  %287 = vrot.lane.b32.xlu0 %v285, 32
  %v288 = vpop.permute.xlu0 %287
  %v290 = vadd.f32 %v280, %v288
  %v291 = vtanh.pop %v290
  %293 = vrot.lane.b32.xlu0 %v291, 64
  %v294 = vpop.permute.xlu0 %293
  %v296 = vmul.f32 %v260, %v294
  %s297 = scalar_lea.vmem %s0, 32
  %v298 = vld [vmem:[%s297] sm:$0xff]
  %v299 = vld [vmem:[%s297 + $0x8] sm:$0xff]
  %301 = vrot.lane.b32.xlu0 %v279, 32
  %v302 = vpop.permute.xlu0 %301
  %305 = vrot.lane.b32.xlu0 %v296, 64
  %v306 = vpop.permute.xlu0 %305
  %v308 = vsel %vm171, %v302, %v306
  %v310 = vsel %vm35, %v308, 0
  %312 = vmatprep.subr.mxu0 %v18
  %313 = vmatpush1.msra.mxu0 %v17
  %314 = vmatprep.subr.mxu0 %v20
  %315 = vmatpush1.msra.mxu0 %v19
  %316 = vmatprep.subr.mxu0 %v22
  %317 = vmatpush1.msra.mxu0 %v21
  %318 = vmatprep.subr.mxu0 %v24
  %319 = vmatpush1.msra.mxu0 %v23
  %320 = vmatprep.subr.mxu0 %v26
  %321 = vmatpush1.msra.mxu0 %v25
  %322 = vmatprep.subr.mxu0 %v28
  %323 = vmatpush1.msra.mxu0 %v27
  %324 = vmatprep.subr.mxu0 %v30
  %325 = vmatpush1.msra.mxu0 %v29
  %326 = vmatprep.subr.mxu0 %v32
  %327 = vmatpush1.msra.mxu0 %v31
  %328 = vmatprep.subr.mxu0 0.0
  %329 = vmatpush1.msra.mxu0 0.0
  %330 = vmatprep.subr.mxu0 0.0
  %331 = vmatpush1.msra.mxu0 0.0
  %332 = vmatprep.subr.mxu0 0.0
  %333 = vmatpush1.msra.mxu0 0.0
  %334 = vmatprep.subr.mxu0 0.0
  %335 = vmatpush1.msra.mxu0 0.0
  %336 = vmatprep.subr.mxu0 0.0
  %337 = vmatpush1.msra.mxu0 0.0
  %338 = vmatprep.subr.mxu0 0.0
  %339 = vmatpush1.msra.mxu0 0.0
  %340 = vmatprep.subr.mxu0 0.0
  %341 = vmatpush1.msra.mxu0 0.0
  %342 = vmatprep.subr.mxu0 0.0
  %343 = vmatpush1.msra.mxu0 0.0
  %344 = vmatprep.subr.mxu0 0.0
  %345 = vmatpush1.msra.mxu0 0.0
  %346 = vmatprep.subr.mxu0 0.0
  %347 = vmatpush1.msra.mxu0 0.0
  %348 = vmatprep.subr.mxu0 0.0
  %349 = vmatpush1.msra.mxu0 0.0
  %350 = vmatprep.subr.mxu0 0.0
  %351 = vmatpush1.msra.mxu0 0.0
  %352 = vmatprep.subr.mxu0 0.0
  %353 = vmatpush1.msra.mxu0 0.0
  %354 = vmatprep.subr.mxu0 0.0
  %355 = vmatpush1.msra.mxu0 0.0
  %356 = vmatprep.subr.mxu0 0.0
  %357 = vmatpush1.msra.mxu0 0.0
  %358 = vmatprep.subr.mxu0 0.0
  %359 = vmatpush1.msra.mxu0 0.0
  %360 = vmatprep.subr.mxu0 0.0
  %361 = vmatpush1.msra.mxu0 0.0
  %362 = vmatprep.subr.mxu0 0.0
  %363 = vmatpush1.msra.mxu0 0.0
  %364 = vmatprep.subr.mxu0 0.0
  %365 = vmatpush1.msra.mxu0 0.0
  %366 = vmatprep.subr.mxu0 0.0
  %367 = vmatpush1.msra.mxu0 0.0
  %368 = vmatprep.subr.mxu0 0.0
  %369 = vmatpush1.msra.mxu0 0.0
  %370 = vmatprep.subr.mxu0 0.0
  %371 = vmatpush1.msra.mxu0 0.0
  %372 = vmatprep.subr.mxu0 0.0
  %373 = vmatpush1.msra.mxu0 0.0
  %374 = vmatprep.subr.mxu0 0.0
  %375 = vmatpush1.msra.mxu0 0.0
  %376 = vmatprep.mubr.f32.mxu0 0.0
  %377 = vmatmul.mubr.f32.gmra.mrb[0].mxu0 %v310
  %v378 = vpop.f32.mrb[0].mxu0
  %v379 = vadd.f32 0.0, %v378
  %v380 = vpop.f32.mrb[0].mxu0
  %v381 = vadd.f32 0.0, %v380
  %382 = vdwg.mxu0
  %v383 = vadd.f32 %v298, %v379
  %v384 = vadd.f32 %v299, %v381
  %v385 = vxor.u32 %v383, 2147483648
  %v386 = vxor.u32 %v384, 2147483648
  %v387 = vmul.f32 %v385, 1.442695
  %v388 = vpow.pop %v387
  %v389 = vmul.f32 %v386, 1.442695
  %v390 = vpow.pop %v389
  %v391 = vadd.f32 %v388, 1.0
  %v392 = vadd.f32 %v390, 1.0
  %v393 = vrcp.pop %v391
  %v394 = vmul.f32 1.0, %v393
  %v395 = vrcp.pop %v392
  %v396 = vmul.f32 1.0, %v395
  %v397 = vtanh.pop %v383
  %v398 = vtanh.pop %v384
  %v399 = vmul.f32 %v394, %v273
  %401 = vrot.lane.b32.xlu0 %v397, 64
  %v402 = vpop.permute.xlu0 %401
  %v404 = vmul.f32 %v394, %v402
  %406 = vrot.lane.b32.xlu0 %v404, 32
  %v407 = vpop.permute.xlu0 %406
  %v409 = vadd.f32 %v399, %v407
  %v410 = vtanh.pop %v409
  %412 = vrot.lane.b32.xlu0 %v410, 64
  %v413 = vpop.permute.xlu0 %412
  %v415 = vmul.f32 %v394, %v413
  %v416 = vmul.f32 %v396, %v290
  %418 = vrot.lane.b32.xlu0 %v398, 64
  %v419 = vpop.permute.xlu0 %418
  %v421 = vmul.f32 %v396, %v419
  %423 = vrot.lane.b32.xlu0 %v421, 32
  %v424 = vpop.permute.xlu0 %423
  %v426 = vadd.f32 %v416, %v424
  %v427 = vtanh.pop %v426
  %429 = vrot.lane.b32.xlu0 %v427, 64
  %v430 = vpop.permute.xlu0 %429
  %v432 = vmul.f32 %v396, %v430
  %s433 = scalar_lea.vmem %s0, 48
  %v434 = vld [vmem:[%s433] sm:$0xff]
  %v435 = vld [vmem:[%s433 + $0x8] sm:$0xff]
  %437 = vrot.lane.b32.xlu0 %v415, 32
  %v438 = vpop.permute.xlu0 %437
  %441 = vrot.lane.b32.xlu0 %v432, 64
  %v442 = vpop.permute.xlu0 %441
  %v444 = vsel %vm171, %v438, %v442
  %v446 = vsel %vm35, %v444, 0
  %448 = vmatprep.subr.mxu0 %v18
  %449 = vmatpush1.msra.mxu0 %v17
  %450 = vmatprep.subr.mxu0 %v20
  %451 = vmatpush1.msra.mxu0 %v19
  %452 = vmatprep.subr.mxu0 %v22
  %453 = vmatpush1.msra.mxu0 %v21
  %454 = vmatprep.subr.mxu0 %v24
  %455 = vmatpush1.msra.mxu0 %v23
  %456 = vmatprep.subr.mxu0 %v26
  %457 = vmatpush1.msra.mxu0 %v25
  %458 = vmatprep.subr.mxu0 %v28
  %459 = vmatpush1.msra.mxu0 %v27
  %460 = vmatprep.subr.mxu0 %v30
  %461 = vmatpush1.msra.mxu0 %v29
  %462 = vmatprep.subr.mxu0 %v32
  %463 = vmatpush1.msra.mxu0 %v31
  %464 = vmatprep.subr.mxu0 0.0
  %465 = vmatpush1.msra.mxu0 0.0
  %466 = vmatprep.subr.mxu0 0.0
  %467 = vmatpush1.msra.mxu0 0.0
  %468 = vmatprep.subr.mxu0 0.0
  %469 = vmatpush1.msra.mxu0 0.0
  %470 = vmatprep.subr.mxu0 0.0
  %471 = vmatpush1.msra.mxu0 0.0
  %472 = vmatprep.subr.mxu0 0.0
  %473 = vmatpush1.msra.mxu0 0.0
  %474 = vmatprep.subr.mxu0 0.0
  %475 = vmatpush1.msra.mxu0 0.0
  %476 = vmatprep.subr.mxu0 0.0
  %477 = vmatpush1.msra.mxu0 0.0
  %478 = vmatprep.subr.mxu0 0.0
  %479 = vmatpush1.msra.mxu0 0.0
  %480 = vmatprep.subr.mxu0 0.0
  %481 = vmatpush1.msra.mxu0 0.0
  %482 = vmatprep.subr.mxu0 0.0
  %483 = vmatpush1.msra.mxu0 0.0
  %484 = vmatprep.subr.mxu0 0.0
  %485 = vmatpush1.msra.mxu0 0.0
  %486 = vmatprep.subr.mxu0 0.0
  %487 = vmatpush1.msra.mxu0 0.0
  %488 = vmatprep.subr.mxu0 0.0
  %489 = vmatpush1.msra.mxu0 0.0
  %490 = vmatprep.subr.mxu0 0.0
  %491 = vmatpush1.msra.mxu0 0.0
  %492 = vmatprep.subr.mxu0 0.0
  %493 = vmatpush1.msra.mxu0 0.0
  %494 = vmatprep.subr.mxu0 0.0
  %495 = vmatpush1.msra.mxu0 0.0
  %496 = vmatprep.subr.mxu0 0.0
  %497 = vmatpush1.msra.mxu0 0.0
  %498 = vmatprep.subr.mxu0 0.0
  %499 = vmatpush1.msra.mxu0 0.0
  %500 = vmatprep.subr.mxu0 0.0
  %501 = vmatpush1.msra.mxu0 0.0
  %502 = vmatprep.subr.mxu0 0.0
  %503 = vmatpush1.msra.mxu0 0.0
  %504 = vmatprep.subr.mxu0 0.0
  %505 = vmatpush1.msra.mxu0 0.0
  %506 = vmatprep.subr.mxu0 0.0
  %507 = vmatpush1.msra.mxu0 0.0
  %508 = vmatprep.subr.mxu0 0.0
  %509 = vmatpush1.msra.mxu0 0.0
  %510 = vmatprep.subr.mxu0 0.0
  %511 = vmatpush1.msra.mxu0 0.0
  %512 = vmatprep.mubr.f32.mxu0 0.0
  %513 = vmatmul.mubr.f32.gmra.mrb[0].mxu0 %v446
  %v514 = vpop.f32.mrb[0].mxu0
  %v515 = vadd.f32 0.0, %v514
  %v516 = vpop.f32.mrb[0].mxu0
  %v517 = vadd.f32 0.0, %v516
  %518 = vdwg.mxu0
  %v519 = vadd.f32 %v434, %v515
  %v520 = vadd.f32 %v435, %v517
  %v521 = vxor.u32 %v519, 2147483648
  %v522 = vxor.u32 %v520, 2147483648
  %v523 = vmul.f32 %v521, 1.442695
  %v524 = vpow.pop %v523
  %v525 = vmul.f32 %v522, 1.442695
  %v526 = vpow.pop %v525
  %v527 = vadd.f32 %v524, 1.0
  %v528 = vadd.f32 %v526, 1.0
  %v529 = vrcp.pop %v527
  %v530 = vmul.f32 1.0, %v529
  %v531 = vrcp.pop %v528
  %v532 = vmul.f32 1.0, %v531
  %v533 = vtanh.pop %v519
  %v534 = vtanh.pop %v520
  %v535 = vmul.f32 %v530, %v409
  %537 = vrot.lane.b32.xlu0 %v533, 64
  %v538 = vpop.permute.xlu0 %537
  %v540 = vmul.f32 %v530, %v538
  %542 = vrot.lane.b32.xlu0 %v540, 32
  %v543 = vpop.permute.xlu0 %542
  %v545 = vadd.f32 %v535, %v543
  %v546 = vtanh.pop %v545
  %548 = vrot.lane.b32.xlu0 %v546, 64
  %v549 = vpop.permute.xlu0 %548
  %v551 = vmul.f32 %v530, %v549
  %v552 = vmul.f32 %v532, %v426
  %554 = vrot.lane.b32.xlu0 %v534, 64
  %v555 = vpop.permute.xlu0 %554
  %v557 = vmul.f32 %v532, %v555
  %559 = vrot.lane.b32.xlu0 %v557, 32
  %v560 = vpop.permute.xlu0 %559
  %v562 = vadd.f32 %v552, %v560
  %v563 = vtanh.pop %v562
  %565 = vrot.lane.b32.xlu0 %v563, 64
  %v566 = vpop.permute.xlu0 %565
  %v568 = vmul.f32 %v532, %v566
  %s569 = scalar_lea.vmem %s0, 64
  %v570 = vld [vmem:[%s569] sm:$0xff]
  %v571 = vld [vmem:[%s569 + $0x8] sm:$0xff]
  %573 = vrot.lane.b32.xlu0 %v551, 32
  %v574 = vpop.permute.xlu0 %573
  %577 = vrot.lane.b32.xlu0 %v568, 64
  %v578 = vpop.permute.xlu0 %577
  %v580 = vsel %vm171, %v574, %v578
  %v582 = vsel %vm35, %v580, 0
  %584 = vmatprep.subr.mxu0 %v18
  %585 = vmatpush1.msra.mxu0 %v17
  %586 = vmatprep.subr.mxu0 %v20
  %587 = vmatpush1.msra.mxu0 %v19
  %588 = vmatprep.subr.mxu0 %v22
  %589 = vmatpush1.msra.mxu0 %v21
  %590 = vmatprep.subr.mxu0 %v24
  %591 = vmatpush1.msra.mxu0 %v23
  %592 = vmatprep.subr.mxu0 %v26
  %593 = vmatpush1.msra.mxu0 %v25
  %594 = vmatprep.subr.mxu0 %v28
  %595 = vmatpush1.msra.mxu0 %v27
  %596 = vmatprep.subr.mxu0 %v30
  %597 = vmatpush1.msra.mxu0 %v29
  %598 = vmatprep.subr.mxu0 %v32
  %599 = vmatpush1.msra.mxu0 %v31
  %600 = vmatprep.subr.mxu0 0.0
  %601 = vmatpush1.msra.mxu0 0.0
  %602 = vmatprep.subr.mxu0 0.0
  %603 = vmatpush1.msra.mxu0 0.0
  %604 = vmatprep.subr.mxu0 0.0
  %605 = vmatpush1.msra.mxu0 0.0
  %606 = vmatprep.subr.mxu0 0.0
  %607 = vmatpush1.msra.mxu0 0.0
  %608 = vmatprep.subr.mxu0 0.0
  %609 = vmatpush1.msra.mxu0 0.0
  %610 = vmatprep.subr.mxu0 0.0
  %611 = vmatpush1.msra.mxu0 0.0
  %612 = vmatprep.subr.mxu0 0.0
  %613 = vmatpush1.msra.mxu0 0.0
  %614 = vmatprep.subr.mxu0 0.0
  %615 = vmatpush1.msra.mxu0 0.0
  %616 = vmatprep.subr.mxu0 0.0
  %617 = vmatpush1.msra.mxu0 0.0
  %618 = vmatprep.subr.mxu0 0.0
  %619 = vmatpush1.msra.mxu0 0.0
  %620 = vmatprep.subr.mxu0 0.0
  %621 = vmatpush1.msra.mxu0 0.0
  %622 = vmatprep.subr.mxu0 0.0
  %623 = vmatpush1.msra.mxu0 0.0
  %624 = vmatprep.subr.mxu0 0.0
  %625 = vmatpush1.msra.mxu0 0.0
  %626 = vmatprep.subr.mxu0 0.0
  %627 = vmatpush1.msra.mxu0 0.0
  %628 = vmatprep.subr.mxu0 0.0
  %629 = vmatpush1.msra.mxu0 0.0
  %630 = vmatprep.subr.mxu0 0.0
  %631 = vmatpush1.msra.mxu0 0.0
  %632 = vmatprep.subr.mxu0 0.0
  %633 = vmatpush1.msra.mxu0 0.0
  %634 = vmatprep.subr.mxu0 0.0
  %635 = vmatpush1.msra.mxu0 0.0
  %636 = vmatprep.subr.mxu0 0.0
  %637 = vmatpush1.msra.mxu0 0.0
  %638 = vmatprep.subr.mxu0 0.0
  %639 = vmatpush1.msra.mxu0 0.0
  %640 = vmatprep.subr.mxu0 0.0
  %641 = vmatpush1.msra.mxu0 0.0
  %642 = vmatprep.subr.mxu0 0.0
  %643 = vmatpush1.msra.mxu0 0.0
  %644 = vmatprep.subr.mxu0 0.0
  %645 = vmatpush1.msra.mxu0 0.0
  %646 = vmatprep.subr.mxu0 0.0
  %647 = vmatpush1.msra.mxu0 0.0
  %648 = vmatprep.mubr.f32.mxu0 0.0
  %649 = vmatmul.mubr.f32.gmra.mrb[0].mxu0 %v582
  %v650 = vpop.f32.mrb[0].mxu0
  %v651 = vadd.f32 0.0, %v650
  %v652 = vpop.f32.mrb[0].mxu0
  %v653 = vadd.f32 0.0, %v652
  %654 = vdwg.mxu0
  %v655 = vadd.f32 %v570, %v651
  %v656 = vadd.f32 %v571, %v653
  %v657 = vxor.u32 %v655, 2147483648
  %v658 = vxor.u32 %v656, 2147483648
  %v659 = vmul.f32 %v657, 1.442695
  %v660 = vpow.pop %v659
  %v661 = vmul.f32 %v658, 1.442695
  %v662 = vpow.pop %v661
  %v663 = vadd.f32 %v660, 1.0
  %v664 = vadd.f32 %v662, 1.0
  %v665 = vrcp.pop %v663
  %v666 = vmul.f32 1.0, %v665
  %v667 = vrcp.pop %v664
  %v668 = vmul.f32 1.0, %v667
  %v669 = vtanh.pop %v655
  %v670 = vtanh.pop %v656
  %v671 = vmul.f32 %v666, %v545
  %673 = vrot.lane.b32.xlu0 %v669, 64
  %v674 = vpop.permute.xlu0 %673
  %v676 = vmul.f32 %v666, %v674
  %678 = vrot.lane.b32.xlu0 %v676, 32
  %v679 = vpop.permute.xlu0 %678
  %v681 = vadd.f32 %v671, %v679
  %v682 = vtanh.pop %v681
  %684 = vrot.lane.b32.xlu0 %v682, 64
  %v685 = vpop.permute.xlu0 %684
  %v687 = vmul.f32 %v666, %v685
  %v688 = vmul.f32 %v668, %v562
  %690 = vrot.lane.b32.xlu0 %v670, 64
  %v691 = vpop.permute.xlu0 %690
  %v693 = vmul.f32 %v668, %v691
  %695 = vrot.lane.b32.xlu0 %v693, 32
  %v696 = vpop.permute.xlu0 %695
  %v698 = vadd.f32 %v688, %v696
  %v699 = vtanh.pop %v698
  %701 = vrot.lane.b32.xlu0 %v699, 64
  %v702 = vpop.permute.xlu0 %701
  %v704 = vmul.f32 %v668, %v702
  %s705 = scalar_lea.vmem %s0, 80
  %v706 = vld [vmem:[%s705] sm:$0xff]
  %v707 = vld [vmem:[%s705 + $0x8] sm:$0xff]
  %709 = vrot.lane.b32.xlu0 %v687, 32
  %v710 = vpop.permute.xlu0 %709
  %713 = vrot.lane.b32.xlu0 %v704, 64
  %v714 = vpop.permute.xlu0 %713
  %v716 = vsel %vm171, %v710, %v714
  %v718 = vsel %vm35, %v716, 0
  %720 = vmatprep.subr.mxu0 %v18
  %721 = vmatpush1.msra.mxu0 %v17
  %722 = vmatprep.subr.mxu0 %v20
  %723 = vmatpush1.msra.mxu0 %v19
  %724 = vmatprep.subr.mxu0 %v22
  %725 = vmatpush1.msra.mxu0 %v21
  %726 = vmatprep.subr.mxu0 %v24
  %727 = vmatpush1.msra.mxu0 %v23
  %728 = vmatprep.subr.mxu0 %v26
  %729 = vmatpush1.msra.mxu0 %v25
  %730 = vmatprep.subr.mxu0 %v28
  %731 = vmatpush1.msra.mxu0 %v27
  %732 = vmatprep.subr.mxu0 %v30
  %733 = vmatpush1.msra.mxu0 %v29
  %734 = vmatprep.subr.mxu0 %v32
  %735 = vmatpush1.msra.mxu0 %v31
  %736 = vmatprep.subr.mxu0 0.0
  %737 = vmatpush1.msra.mxu0 0.0
  %738 = vmatprep.subr.mxu0 0.0
  %739 = vmatpush1.msra.mxu0 0.0
  %740 = vmatprep.subr.mxu0 0.0
  %741 = vmatpush1.msra.mxu0 0.0
  %742 = vmatprep.subr.mxu0 0.0
  %743 = vmatpush1.msra.mxu0 0.0
  %744 = vmatprep.subr.mxu0 0.0
  %745 = vmatpush1.msra.mxu0 0.0
  %746 = vmatprep.subr.mxu0 0.0
  %747 = vmatpush1.msra.mxu0 0.0
  %748 = vmatprep.subr.mxu0 0.0
  %749 = vmatpush1.msra.mxu0 0.0
  %750 = vmatprep.subr.mxu0 0.0
  %751 = vmatpush1.msra.mxu0 0.0
  %752 = vmatprep.subr.mxu0 0.0
  %753 = vmatpush1.msra.mxu0 0.0
  %754 = vmatprep.subr.mxu0 0.0
  %755 = vmatpush1.msra.mxu0 0.0
  %756 = vmatprep.subr.mxu0 0.0
  %757 = vmatpush1.msra.mxu0 0.0
  %758 = vmatprep.subr.mxu0 0.0
  %759 = vmatpush1.msra.mxu0 0.0
  %760 = vmatprep.subr.mxu0 0.0
  %761 = vmatpush1.msra.mxu0 0.0
  %762 = vmatprep.subr.mxu0 0.0
  %763 = vmatpush1.msra.mxu0 0.0
  %764 = vmatprep.subr.mxu0 0.0
  %765 = vmatpush1.msra.mxu0 0.0
  %766 = vmatprep.subr.mxu0 0.0
  %767 = vmatpush1.msra.mxu0 0.0
  %768 = vmatprep.subr.mxu0 0.0
  %769 = vmatpush1.msra.mxu0 0.0
  %770 = vmatprep.subr.mxu0 0.0
  %771 = vmatpush1.msra.mxu0 0.0
  %772 = vmatprep.subr.mxu0 0.0
  %773 = vmatpush1.msra.mxu0 0.0
  %774 = vmatprep.subr.mxu0 0.0
  %775 = vmatpush1.msra.mxu0 0.0
  %776 = vmatprep.subr.mxu0 0.0
  %777 = vmatpush1.msra.mxu0 0.0
  %778 = vmatprep.subr.mxu0 0.0
  %779 = vmatpush1.msra.mxu0 0.0
  %780 = vmatprep.subr.mxu0 0.0
  %781 = vmatpush1.msra.mxu0 0.0
  %782 = vmatprep.subr.mxu0 0.0
  %783 = vmatpush1.msra.mxu0 0.0
  %784 = vmatprep.mubr.f32.mxu0 0.0
  %785 = vmatmul.mubr.f32.gmra.mrb[0].mxu0 %v718
  %v786 = vpop.f32.mrb[0].mxu0
  %v787 = vadd.f32 0.0, %v786
  %v788 = vpop.f32.mrb[0].mxu0
  %v789 = vadd.f32 0.0, %v788
  %790 = vdwg.mxu0
  %v791 = vadd.f32 %v706, %v787
  %v792 = vadd.f32 %v707, %v789
  %v793 = vxor.u32 %v791, 2147483648
  %v794 = vxor.u32 %v792, 2147483648
  %v795 = vmul.f32 %v793, 1.442695
  %v796 = vpow.pop %v795
  %v797 = vmul.f32 %v794, 1.442695
  %v798 = vpow.pop %v797
  %v799 = vadd.f32 %v796, 1.0
  %v800 = vadd.f32 %v798, 1.0
  %v801 = vrcp.pop %v799
  %v802 = vmul.f32 1.0, %v801
  %v803 = vrcp.pop %v800
  %v804 = vmul.f32 1.0, %v803
  %v805 = vtanh.pop %v791
  %v806 = vtanh.pop %v792
  %v807 = vmul.f32 %v802, %v681
  %809 = vrot.lane.b32.xlu0 %v805, 64
  %v810 = vpop.permute.xlu0 %809
  %v812 = vmul.f32 %v802, %v810
  %814 = vrot.lane.b32.xlu0 %v812, 32
  %v815 = vpop.permute.xlu0 %814
  %v817 = vadd.f32 %v807, %v815
  %v818 = vtanh.pop %v817
  %820 = vrot.lane.b32.xlu0 %v818, 64
  %v821 = vpop.permute.xlu0 %820
  %v823 = vmul.f32 %v802, %v821
  %v824 = vmul.f32 %v804, %v698
  %826 = vrot.lane.b32.xlu0 %v806, 64
  %v827 = vpop.permute.xlu0 %826
  %v829 = vmul.f32 %v804, %v827
  %831 = vrot.lane.b32.xlu0 %v829, 32
  %v832 = vpop.permute.xlu0 %831
  %v834 = vadd.f32 %v824, %v832
  %v835 = vtanh.pop %v834
  %837 = vrot.lane.b32.xlu0 %v835, 64
  %v838 = vpop.permute.xlu0 %837
  %v840 = vmul.f32 %v804, %v838
  %s841 = scalar_lea.vmem %s0, 96
  %v842 = vld [vmem:[%s841] sm:$0xff]
  %v843 = vld [vmem:[%s841 + $0x8] sm:$0xff]
  %845 = vrot.lane.b32.xlu0 %v823, 32
  %v846 = vpop.permute.xlu0 %845
  %849 = vrot.lane.b32.xlu0 %v840, 64
  %v850 = vpop.permute.xlu0 %849
  %v852 = vsel %vm171, %v846, %v850
  %v854 = vsel %vm35, %v852, 0
  %856 = vmatprep.subr.mxu0 %v18
  %857 = vmatpush1.msra.mxu0 %v17
  %858 = vmatprep.subr.mxu0 %v20
  %859 = vmatpush1.msra.mxu0 %v19
  %860 = vmatprep.subr.mxu0 %v22
  %861 = vmatpush1.msra.mxu0 %v21
  %862 = vmatprep.subr.mxu0 %v24
  %863 = vmatpush1.msra.mxu0 %v23
  %864 = vmatprep.subr.mxu0 %v26
  %865 = vmatpush1.msra.mxu0 %v25
  %866 = vmatprep.subr.mxu0 %v28
  %867 = vmatpush1.msra.mxu0 %v27
  %868 = vmatprep.subr.mxu0 %v30
  %869 = vmatpush1.msra.mxu0 %v29
  %870 = vmatprep.subr.mxu0 %v32
  %871 = vmatpush1.msra.mxu0 %v31
  %872 = vmatprep.subr.mxu0 0.0
  %873 = vmatpush1.msra.mxu0 0.0
  %874 = vmatprep.subr.mxu0 0.0
  %875 = vmatpush1.msra.mxu0 0.0
  %876 = vmatprep.subr.mxu0 0.0
  %877 = vmatpush1.msra.mxu0 0.0
  %878 = vmatprep.subr.mxu0 0.0
  %879 = vmatpush1.msra.mxu0 0.0
  %880 = vmatprep.subr.mxu0 0.0
  %881 = vmatpush1.msra.mxu0 0.0
  %882 = vmatprep.subr.mxu0 0.0
  %883 = vmatpush1.msra.mxu0 0.0
  %884 = vmatprep.subr.mxu0 0.0
  %885 = vmatpush1.msra.mxu0 0.0
  %886 = vmatprep.subr.mxu0 0.0
  %887 = vmatpush1.msra.mxu0 0.0
  %888 = vmatprep.subr.mxu0 0.0
  %889 = vmatpush1.msra.mxu0 0.0
  %890 = vmatprep.subr.mxu0 0.0
  %891 = vmatpush1.msra.mxu0 0.0
  %892 = vmatprep.subr.mxu0 0.0
  %893 = vmatpush1.msra.mxu0 0.0
  %894 = vmatprep.subr.mxu0 0.0
  %895 = vmatpush1.msra.mxu0 0.0
  %896 = vmatprep.subr.mxu0 0.0
  %897 = vmatpush1.msra.mxu0 0.0
  %898 = vmatprep.subr.mxu0 0.0
  %899 = vmatpush1.msra.mxu0 0.0
  %900 = vmatprep.subr.mxu0 0.0
  %901 = vmatpush1.msra.mxu0 0.0
  %902 = vmatprep.subr.mxu0 0.0
  %903 = vmatpush1.msra.mxu0 0.0
  %904 = vmatprep.subr.mxu0 0.0
  %905 = vmatpush1.msra.mxu0 0.0
  %906 = vmatprep.subr.mxu0 0.0
  %907 = vmatpush1.msra.mxu0 0.0
  %908 = vmatprep.subr.mxu0 0.0
  %909 = vmatpush1.msra.mxu0 0.0
  %910 = vmatprep.subr.mxu0 0.0
  %911 = vmatpush1.msra.mxu0 0.0
  %912 = vmatprep.subr.mxu0 0.0
  %913 = vmatpush1.msra.mxu0 0.0
  %914 = vmatprep.subr.mxu0 0.0
  %915 = vmatpush1.msra.mxu0 0.0
  %916 = vmatprep.subr.mxu0 0.0
  %917 = vmatpush1.msra.mxu0 0.0
  %918 = vmatprep.subr.mxu0 0.0
  %919 = vmatpush1.msra.mxu0 0.0
  %920 = vmatprep.mubr.f32.mxu0 0.0
  %921 = vmatmul.mubr.f32.gmra.mrb[0].mxu0 %v854
  %v922 = vpop.f32.mrb[0].mxu0
  %v923 = vadd.f32 0.0, %v922
  %v924 = vpop.f32.mrb[0].mxu0
  %v925 = vadd.f32 0.0, %v924
  %926 = vdwg.mxu0
  %v927 = vadd.f32 %v842, %v923
  %v928 = vadd.f32 %v843, %v925
  %v929 = vxor.u32 %v927, 2147483648
  %v930 = vxor.u32 %v928, 2147483648
  %v931 = vmul.f32 %v929, 1.442695
  %v932 = vpow.pop %v931
  %v933 = vmul.f32 %v930, 1.442695
  %v934 = vpow.pop %v933
  %v935 = vadd.f32 %v932, 1.0
  %v936 = vadd.f32 %v934, 1.0
  %v937 = vrcp.pop %v935
  %v938 = vmul.f32 1.0, %v937
  %v939 = vrcp.pop %v936
  %v940 = vmul.f32 1.0, %v939
  %v941 = vtanh.pop %v927
  %v942 = vtanh.pop %v928
  %v943 = vmul.f32 %v938, %v817
  %945 = vrot.lane.b32.xlu0 %v941, 64
  %v946 = vpop.permute.xlu0 %945
  %v948 = vmul.f32 %v938, %v946
  %950 = vrot.lane.b32.xlu0 %v948, 32
  %v951 = vpop.permute.xlu0 %950
  %v953 = vadd.f32 %v943, %v951
  %v954 = vtanh.pop %v953
  %956 = vrot.lane.b32.xlu0 %v954, 64
  %v957 = vpop.permute.xlu0 %956
  %v959 = vmul.f32 %v938, %v957
  %v960 = vmul.f32 %v940, %v834
  %962 = vrot.lane.b32.xlu0 %v942, 64
  %v963 = vpop.permute.xlu0 %962
  %v965 = vmul.f32 %v940, %v963
  %967 = vrot.lane.b32.xlu0 %v965, 32
  %v968 = vpop.permute.xlu0 %967
  %v970 = vadd.f32 %v960, %v968
  %v971 = vtanh.pop %v970
  %973 = vrot.lane.b32.xlu0 %v971, 64
  %v974 = vpop.permute.xlu0 %973
  %v976 = vmul.f32 %v940, %v974
  %s977 = scalar_lea.vmem %s0, 112
  %v978 = vld [vmem:[%s977] sm:$0xff]
  %v979 = vld [vmem:[%s977 + $0x8] sm:$0xff]
  %981 = vrot.lane.b32.xlu0 %v959, 32
  %v982 = vpop.permute.xlu0 %981
  %985 = vrot.lane.b32.xlu0 %v976, 64
  %v986 = vpop.permute.xlu0 %985
  %v988 = vsel %vm171, %v982, %v986
  %v990 = vsel %vm35, %v988, 0
  %992 = vmatprep.subr.mxu0 %v18
  %993 = vmatpush1.msra.mxu0 %v17
  %994 = vmatprep.subr.mxu0 %v20
  %995 = vmatpush1.msra.mxu0 %v19
  %996 = vmatprep.subr.mxu0 %v22
  %997 = vmatpush1.msra.mxu0 %v21
  %998 = vmatprep.subr.mxu0 %v24
  %999 = vmatpush1.msra.mxu0 %v23
  %1000 = vmatprep.subr.mxu0 %v26
  %1001 = vmatpush1.msra.mxu0 %v25
  %1002 = vmatprep.subr.mxu0 %v28
  %1003 = vmatpush1.msra.mxu0 %v27
  %1004 = vmatprep.subr.mxu0 %v30
  %1005 = vmatpush1.msra.mxu0 %v29
  %1006 = vmatprep.subr.mxu0 %v32
  %1007 = vmatpush1.msra.mxu0 %v31
  %1008 = vmatprep.subr.mxu0 0.0
  %1009 = vmatpush1.msra.mxu0 0.0
  %1010 = vmatprep.subr.mxu0 0.0
  %1011 = vmatpush1.msra.mxu0 0.0
  %1012 = vmatprep.subr.mxu0 0.0
  %1013 = vmatpush1.msra.mxu0 0.0
  %1014 = vmatprep.subr.mxu0 0.0
  %1015 = vmatpush1.msra.mxu0 0.0
  %1016 = vmatprep.subr.mxu0 0.0
  %1017 = vmatpush1.msra.mxu0 0.0
  %1018 = vmatprep.subr.mxu0 0.0
  %1019 = vmatpush1.msra.mxu0 0.0
  %1020 = vmatprep.subr.mxu0 0.0
  %1021 = vmatpush1.msra.mxu0 0.0
  %1022 = vmatprep.subr.mxu0 0.0
  %1023 = vmatpush1.msra.mxu0 0.0
  %1024 = vmatprep.subr.mxu0 0.0
  %1025 = vmatpush1.msra.mxu0 0.0
  %1026 = vmatprep.subr.mxu0 0.0
  %1027 = vmatpush1.msra.mxu0 0.0
  %1028 = vmatprep.subr.mxu0 0.0
  %1029 = vmatpush1.msra.mxu0 0.0
  %1030 = vmatprep.subr.mxu0 0.0
  %1031 = vmatpush1.msra.mxu0 0.0
  %1032 = vmatprep.subr.mxu0 0.0
  %1033 = vmatpush1.msra.mxu0 0.0
  %1034 = vmatprep.subr.mxu0 0.0
  %1035 = vmatpush1.msra.mxu0 0.0
  %1036 = vmatprep.subr.mxu0 0.0
  %1037 = vmatpush1.msra.mxu0 0.0
  %1038 = vmatprep.subr.mxu0 0.0
  %1039 = vmatpush1.msra.mxu0 0.0
  %1040 = vmatprep.subr.mxu0 0.0
  %1041 = vmatpush1.msra.mxu0 0.0
  %1042 = vmatprep.subr.mxu0 0.0
  %1043 = vmatpush1.msra.mxu0 0.0
  %1044 = vmatprep.subr.mxu0 0.0
  %1045 = vmatpush1.msra.mxu0 0.0
  %1046 = vmatprep.subr.mxu0 0.0
  %1047 = vmatpush1.msra.mxu0 0.0
  %1048 = vmatprep.subr.mxu0 0.0
  %1049 = vmatpush1.msra.mxu0 0.0
  %1050 = vmatprep.subr.mxu0 0.0
  %1051 = vmatpush1.msra.mxu0 0.0
  %1052 = vmatprep.subr.mxu0 0.0
  %1053 = vmatpush1.msra.mxu0 0.0
  %1054 = vmatprep.subr.mxu0 0.0
  %1055 = vmatpush1.msra.mxu0 0.0
  %1056 = vmatprep.mubr.f32.mxu0 0.0
  %1057 = vmatmul.mubr.f32.gmra.mrb[0].mxu0 %v990
  %v1058 = vpop.f32.mrb[0].mxu0
  %v1059 = vadd.f32 0.0, %v1058
  %v1060 = vpop.f32.mrb[0].mxu0
  %v1061 = vadd.f32 0.0, %v1060
  %1062 = vdwg.mxu0
  %v1063 = vadd.f32 %v978, %v1059
  %v1064 = vadd.f32 %v979, %v1061
  %v1065 = vxor.u32 %v1063, 2147483648
  %v1066 = vxor.u32 %v1064, 2147483648
  %v1067 = vmul.f32 %v1065, 1.442695
  %v1068 = vpow.pop %v1067
  %v1069 = vmul.f32 %v1066, 1.442695
  %v1070 = vpow.pop %v1069
  %v1071 = vadd.f32 %v1068, 1.0
  %v1072 = vadd.f32 %v1070, 1.0
  %v1073 = vrcp.pop %v1071
  %v1074 = vmul.f32 1.0, %v1073
  %v1075 = vrcp.pop %v1072
  %v1076 = vmul.f32 1.0, %v1075
  %v1077 = vtanh.pop %v1063
  %v1078 = vtanh.pop %v1064
  %v1079 = vmul.f32 %v1074, %v953
  %1081 = vrot.lane.b32.xlu0 %v1077, 64
  %v1082 = vpop.permute.xlu0 %1081
  %v1084 = vmul.f32 %v1074, %v1082
  %1086 = vrot.lane.b32.xlu0 %v1084, 32
  %v1087 = vpop.permute.xlu0 %1086
  %v1089 = vadd.f32 %v1079, %v1087
  %v1090 = vtanh.pop %v1089
  %1092 = vrot.lane.b32.xlu0 %v1090, 64
  %v1093 = vpop.permute.xlu0 %1092
  %v1095 = vmul.f32 %v1074, %v1093
  %v1096 = vmul.f32 %v1076, %v970
  %1098 = vrot.lane.b32.xlu0 %v1078, 64
  %v1099 = vpop.permute.xlu0 %1098
  %v1101 = vmul.f32 %v1076, %v1099
  %1103 = vrot.lane.b32.xlu0 %v1101, 32
  %v1104 = vpop.permute.xlu0 %1103
  %v1106 = vadd.f32 %v1096, %v1104
  %v1107 = vtanh.pop %v1106
  %1109 = vrot.lane.b32.xlu0 %v1107, 64
  %v1110 = vpop.permute.xlu0 %1109
  %v1112 = vmul.f32 %v1076, %v1110
  %v1113 = vld [vmem:[%s2] sm:$0xff]
  %v1114 = vld [vmem:[%s2 + $0x8] sm:$0xff]
  %v1115 = vld [vmem:[%s2 + $0x10] sm:$0xff]
  %v1116 = vld [vmem:[%s2 + $0x18] sm:$0xff]
  %v1117 = vld [vmem:[%s2 + $0x20] sm:$0xff]
  %v1118 = vld [vmem:[%s2 + $0x28] sm:$0xff]
  %v1119 = vld [vmem:[%s2 + $0x30] sm:$0xff]
  %v1120 = vld [vmem:[%s2 + $0x38] sm:$0xff]
  %1122 = vrot.lane.b32.xlu0 %v1112, 32
  %v1123 = vpop.permute.xlu0 %1122
  %1124 = vrot.lane.b32.xlu0 %v976, 32
  %v1125 = vpop.permute.xlu0 %1124
  %1126 = vrot.lane.b32.xlu0 %v840, 32
  %v1127 = vpop.permute.xlu0 %1126
  %1128 = vrot.lane.b32.xlu0 %v704, 32
  %v1129 = vpop.permute.xlu0 %1128
  %1130 = vrot.lane.b32.xlu0 %v568, 32
  %v1131 = vpop.permute.xlu0 %1130
  %1132 = vrot.lane.b32.xlu0 %v432, 32
  %v1133 = vpop.permute.xlu0 %1132
  %1134 = vrot.lane.b32.xlu0 %v296, 32
  %v1135 = vpop.permute.xlu0 %1134
  %1136 = vrot.lane.b32.xlu0 %v159, 32
  %v1137 = vpop.permute.xlu0 %1136
  %v1138 = vsel %vm171, %v1123, 0
  %v1140 = vsel %vm171, %v1125, 0
  %v1142 = vsel %vm171, %v1127, 0
  %v1144 = vsel %vm171, %v1129, 0
  %v1146 = vsel %vm171, %v1131, 0
  %v1148 = vsel %vm171, %v1133, 0
  %v1150 = vsel %vm171, %v1135, 0
  %v1152 = vsel %vm171, %v1137, 0
  %1154 = vmatprep.subr.mxu0 0.0
  %1155 = vmatpush1.msra.mxu0 %v1117
  %1156 = vmatprep.subr.mxu0 0.0
  %1157 = vmatpush1.msra.mxu0 %v1118
  %1158 = vmatprep.subr.mxu0 0.0
  %1159 = vmatpush1.msra.mxu0 %v1119
  %1160 = vmatprep.subr.mxu0 0.0
  %1161 = vmatpush1.msra.mxu0 %v1120
  %1162 = vmatprep.subr.mxu0 0.0
  %1163 = vmatpush1.msra.mxu0 0.0
  %1164 = vmatprep.subr.mxu0 0.0
  %1165 = vmatpush1.msra.mxu0 0.0
  %1166 = vmatprep.subr.mxu0 0.0
  %1167 = vmatpush1.msra.mxu0 0.0
  %1168 = vmatprep.subr.mxu0 0.0
  %1169 = vmatpush1.msra.mxu0 0.0
  %1170 = vmatprep.subr.mxu0 0.0
  %1171 = vmatpush1.msra.mxu0 0.0
  %1172 = vmatprep.subr.mxu0 0.0
  %1173 = vmatpush1.msra.mxu0 0.0
  %1174 = vmatprep.subr.mxu0 0.0
  %1175 = vmatpush1.msra.mxu0 0.0
  %1176 = vmatprep.subr.mxu0 0.0
  %1177 = vmatpush1.msra.mxu0 0.0
  %1178 = vmatprep.subr.mxu0 0.0
  %1179 = vmatpush1.msra.mxu0 0.0
  %1180 = vmatprep.subr.mxu0 0.0
  %1181 = vmatpush1.msra.mxu0 0.0
  %1182 = vmatprep.subr.mxu0 0.0
  %1183 = vmatpush1.msra.mxu0 0.0
  %1184 = vmatprep.subr.mxu0 0.0
  %1185 = vmatpush1.msra.mxu0 0.0
  %1186 = vmatprep.subr.mxu0 0.0
  %1187 = vmatpush1.msra.mxu0 0.0
  %1188 = vmatprep.subr.mxu0 0.0
  %1189 = vmatpush1.msra.mxu0 0.0
  %1190 = vmatprep.subr.mxu0 0.0
  %1191 = vmatpush1.msra.mxu0 0.0
  %1192 = vmatprep.subr.mxu0 0.0
  %1193 = vmatpush1.msra.mxu0 0.0
  %1194 = vmatprep.subr.mxu0 0.0
  %1195 = vmatpush1.msra.mxu0 0.0
  %1196 = vmatprep.subr.mxu0 0.0
  %1197 = vmatpush1.msra.mxu0 0.0
  %1198 = vmatprep.subr.mxu0 0.0
  %1199 = vmatpush1.msra.mxu0 0.0
  %1200 = vmatprep.subr.mxu0 0.0
  %1201 = vmatpush1.msra.mxu0 0.0
  %1202 = vmatprep.subr.mxu0 0.0
  %1203 = vmatpush1.msra.mxu0 0.0
  %1204 = vmatprep.subr.mxu0 0.0
  %1205 = vmatpush1.msra.mxu0 0.0
  %1206 = vmatprep.subr.mxu0 0.0
  %1207 = vmatpush1.msra.mxu0 0.0
  %1208 = vmatprep.subr.mxu0 0.0
  %1209 = vmatpush1.msra.mxu0 0.0
  %1210 = vmatprep.subr.mxu0 0.0
  %1211 = vmatpush1.msra.mxu0 0.0
  %1212 = vmatprep.subr.mxu0 0.0
  %1213 = vmatpush1.msra.mxu0 0.0
  %1214 = vmatprep.subr.mxu0 0.0
  %1215 = vmatpush1.msra.mxu0 0.0
  %1216 = vmatprep.subr.mxu0 0.0
  %1217 = vmatpush1.msra.mxu0 0.0
  %1218 = vmatprep.mubr.f32.mxu0 0.0
  %1219 = vmatmul.mubr.f32.gmra.mrb[0].mxu0 %v1138
  %v1220 = vpop.f32.mrb[0].mxu0
  %v1221 = vadd.f32 0.0, %v1220
  %v1222 = vpop.f32.mrb[0].mxu0
  %1223 = vmatprep.mubr.f32.mxu0 0.0
  %1224 = vmatmul.mubr.f32.gmra.mrb[0].mxu0 %v1140
  %v1225 = vpop.f32.mrb[0].mxu0
  %v1226 = vadd.f32 0.0, %v1225
  %v1227 = vpop.f32.mrb[0].mxu0
  %1228 = vmatprep.mubr.f32.mxu0 0.0
  %1229 = vmatmul.mubr.f32.gmra.mrb[0].mxu0 %v1142
  %v1230 = vpop.f32.mrb[0].mxu0
  %v1231 = vadd.f32 0.0, %v1230
  %v1232 = vpop.f32.mrb[0].mxu0
  %1233 = vmatprep.mubr.f32.mxu0 0.0
  %1234 = vmatmul.mubr.f32.gmra.mrb[0].mxu0 %v1144
  %v1235 = vpop.f32.mrb[0].mxu0
  %v1236 = vadd.f32 0.0, %v1235
  %v1237 = vpop.f32.mrb[0].mxu0
  %1238 = vmatprep.mubr.f32.mxu0 0.0
  %1239 = vmatmul.mubr.f32.gmra.mrb[0].mxu0 %v1146
  %v1240 = vpop.f32.mrb[0].mxu0
  %v1241 = vadd.f32 0.0, %v1240
  %v1242 = vpop.f32.mrb[0].mxu0
  %1243 = vmatprep.mubr.f32.mxu0 0.0
  %1244 = vmatmul.mubr.f32.gmra.mrb[0].mxu0 %v1148
  %v1245 = vpop.f32.mrb[0].mxu0
  %v1246 = vadd.f32 0.0, %v1245
  %v1247 = vpop.f32.mrb[0].mxu0
  %1248 = vmatprep.mubr.f32.mxu0 0.0
  %1249 = vmatmul.mubr.f32.gmra.mrb[0].mxu0 %v1150
  %v1250 = vpop.f32.mrb[0].mxu0
  %v1251 = vadd.f32 0.0, %v1250
  %v1252 = vpop.f32.mrb[0].mxu0
  %1253 = vmatprep.mubr.f32.mxu0 0.0
  %1254 = vmatmul.mubr.f32.gmra.mrb[0].mxu0 %v1152
  %v1255 = vpop.f32.mrb[0].mxu0
  %v1256 = vadd.f32 0.0, %v1255
  %v1257 = vpop.f32.mrb[0].mxu0
  %1258 = vdwg.mxu0
  %1260 = vrot.lane.b32.xlu0 %v1095, 32
  %v1261 = vpop.permute.xlu0 %1260
  %v1262 = vsel %vm171, %v165, 0
  %v1264 = vsel %vm171, %v302, 0
  %v1266 = vsel %vm171, %v438, 0
  %v1268 = vsel %vm171, %v574, 0
  %v1270 = vsel %vm171, %v710, 0
  %v1272 = vsel %vm171, %v846, 0
  %v1274 = vsel %vm171, %v982, 0
  %v1276 = vsel %vm171, %v1261, 0
  %1278 = vmatprep.subr.mxu0 0.0
  %1279 = vmatpush1.msra.mxu0 %v1113
  %1280 = vmatprep.subr.mxu0 0.0
  %1281 = vmatpush1.msra.mxu0 %v1114
  %1282 = vmatprep.subr.mxu0 0.0
  %1283 = vmatpush1.msra.mxu0 %v1115
  %1284 = vmatprep.subr.mxu0 0.0
  %1285 = vmatpush1.msra.mxu0 %v1116
  %1286 = vmatprep.subr.mxu0 0.0
  %1287 = vmatpush1.msra.mxu0 0.0
  %1288 = vmatprep.subr.mxu0 0.0
  %1289 = vmatpush1.msra.mxu0 0.0
  %1290 = vmatprep.subr.mxu0 0.0
  %1291 = vmatpush1.msra.mxu0 0.0
  %1292 = vmatprep.subr.mxu0 0.0
  %1293 = vmatpush1.msra.mxu0 0.0
  %1294 = vmatprep.subr.mxu0 0.0
  %1295 = vmatpush1.msra.mxu0 0.0
  %1296 = vmatprep.subr.mxu0 0.0
  %1297 = vmatpush1.msra.mxu0 0.0
  %1298 = vmatprep.subr.mxu0 0.0
  %1299 = vmatpush1.msra.mxu0 0.0
  %1300 = vmatprep.subr.mxu0 0.0
  %1301 = vmatpush1.msra.mxu0 0.0
  %1302 = vmatprep.subr.mxu0 0.0
  %1303 = vmatpush1.msra.mxu0 0.0
  %1304 = vmatprep.subr.mxu0 0.0
  %1305 = vmatpush1.msra.mxu0 0.0
  %1306 = vmatprep.subr.mxu0 0.0
  %1307 = vmatpush1.msra.mxu0 0.0
  %1308 = vmatprep.subr.mxu0 0.0
  %1309 = vmatpush1.msra.mxu0 0.0
  %1310 = vmatprep.subr.mxu0 0.0
  %1311 = vmatpush1.msra.mxu0 0.0
  %1312 = vmatprep.subr.mxu0 0.0
  %1313 = vmatpush1.msra.mxu0 0.0
  %1314 = vmatprep.subr.mxu0 0.0
  %1315 = vmatpush1.msra.mxu0 0.0
  %1316 = vmatprep.subr.mxu0 0.0
  %1317 = vmatpush1.msra.mxu0 0.0
  %1318 = vmatprep.subr.mxu0 0.0
  %1319 = vmatpush1.msra.mxu0 0.0
  %1320 = vmatprep.subr.mxu0 0.0
  %1321 = vmatpush1.msra.mxu0 0.0
  %1322 = vmatprep.subr.mxu0 0.0
  %1323 = vmatpush1.msra.mxu0 0.0
  %1324 = vmatprep.subr.mxu0 0.0
  %1325 = vmatpush1.msra.mxu0 0.0
  %1326 = vmatprep.subr.mxu0 0.0
  %1327 = vmatpush1.msra.mxu0 0.0
  %1328 = vmatprep.subr.mxu0 0.0
  %1329 = vmatpush1.msra.mxu0 0.0
  %1330 = vmatprep.subr.mxu0 0.0
  %1331 = vmatpush1.msra.mxu0 0.0
  %1332 = vmatprep.subr.mxu0 0.0
  %1333 = vmatpush1.msra.mxu0 0.0
  %1334 = vmatprep.subr.mxu0 0.0
  %1335 = vmatpush1.msra.mxu0 0.0
  %1336 = vmatprep.subr.mxu0 0.0
  %1337 = vmatpush1.msra.mxu0 0.0
  %1338 = vmatprep.subr.mxu0 0.0
  %1339 = vmatpush1.msra.mxu0 0.0
  %1340 = vmatprep.subr.mxu0 0.0
  %1341 = vmatpush1.msra.mxu0 0.0
  %1342 = vmatprep.mubr.f32.mxu0 0.0
  %1343 = vmatmul.mubr.f32.gmra.mrb[0].mxu0 %v1262
  %v1344 = vpop.f32.mrb[0].mxu0
  %v1345 = vadd.f32 %v1221, %v1344
  %v1346 = vpop.f32.mrb[0].mxu0
  %1347 = vmatprep.mubr.f32.mxu0 0.0
  %1348 = vmatmul.mubr.f32.gmra.mrb[0].mxu0 %v1264
  %v1349 = vpop.f32.mrb[0].mxu0
  %v1350 = vadd.f32 %v1226, %v1349
  %v1351 = vpop.f32.mrb[0].mxu0
  %1352 = vmatprep.mubr.f32.mxu0 0.0
  %1353 = vmatmul.mubr.f32.gmra.mrb[0].mxu0 %v1266
  %v1354 = vpop.f32.mrb[0].mxu0
  %v1355 = vadd.f32 %v1231, %v1354
  %v1356 = vpop.f32.mrb[0].mxu0
  %1357 = vmatprep.mubr.f32.mxu0 0.0
  %1358 = vmatmul.mubr.f32.gmra.mrb[0].mxu0 %v1268
  %v1359 = vpop.f32.mrb[0].mxu0
  %v1360 = vadd.f32 %v1236, %v1359
  %v1361 = vpop.f32.mrb[0].mxu0
  %1362 = vmatprep.mubr.f32.mxu0 0.0
  %1363 = vmatmul.mubr.f32.gmra.mrb[0].mxu0 %v1270
  %v1364 = vpop.f32.mrb[0].mxu0
  %v1365 = vadd.f32 %v1241, %v1364
  %v1366 = vpop.f32.mrb[0].mxu0
  %1367 = vmatprep.mubr.f32.mxu0 0.0
  %1368 = vmatmul.mubr.f32.gmra.mrb[0].mxu0 %v1272
  %v1369 = vpop.f32.mrb[0].mxu0
  %v1370 = vadd.f32 %v1246, %v1369
  %v1371 = vpop.f32.mrb[0].mxu0
  %1372 = vmatprep.mubr.f32.mxu0 0.0
  %1373 = vmatmul.mubr.f32.gmra.mrb[0].mxu0 %v1274
  %v1374 = vpop.f32.mrb[0].mxu0
  %v1375 = vadd.f32 %v1251, %v1374
  %v1376 = vpop.f32.mrb[0].mxu0
  %1377 = vmatprep.mubr.f32.mxu0 0.0
  %1378 = vmatmul.mubr.f32.gmra.mrb[0].mxu0 %v1276
  %v1379 = vpop.f32.mrb[0].mxu0
  %v1380 = vadd.f32 %v1256, %v1379
  %v1381 = vpop.f32.mrb[0].mxu0
  %1382 = vdwg.mxu0
  %v1383 = vld [vmem:[%s3] sm:$0x1]
  %v1385 = vlaneseq
  %v1386 = vshrl.u32 %v1385, 7
  %v1387 = vsub.s32 0, %v1386
  %v1388 = vrot.slane %v1383, %v1387
  %v1390 = vadd.f32 %v1345, %v1388
  %v1391 = vadd.f32 %v1350, %v1388
  %v1392 = vadd.f32 %v1355, %v1388
  %v1393 = vadd.f32 %v1360, %v1388
  %v1394 = vadd.f32 %v1365, %v1388
  %v1395 = vadd.f32 %v1370, %v1388
  %v1396 = vadd.f32 %v1375, %v1388
  %v1397 = vadd.f32 %v1380, %v1388
  %1398 = vst [vmem:[%s4] sm:$0xff] %v1390
  %1399 = vst [vmem:[%s4 + $0x8] sm:$0xff] %v1391
  %1400 = vst [vmem:[%s4 + $0x10] sm:$0xff] %v1392
  %1401 = vst [vmem:[%s4 + $0x18] sm:$0xff] %v1393
  %1402 = vst [vmem:[%s4 + $0x20] sm:$0xff] %v1394
  %1403 = vst [vmem:[%s4 + $0x28] sm:$0xff] %v1395
  %1404 = vst [vmem:[%s4 + $0x30] sm:$0xff] %v1396
  %1405 = vst [vmem:[%s4 + $0x38] sm:$0xff] %v1397
  // Predicated region
  $region18: #{slu_tagger_forward.1} parent=0 // pred_check
    _
  $region19: #{slu_tagger_forward.1} parent=0 // pred_check_branch
    %1407 = sbr.rel (0) target = $region21
  $region20: #{slu_tagger_forward.1} parent=0 // pred_region
    _
  $region21: #{slu_tagger_forward.1} parent=0 // pred_fallthru
    _
  // Predicated region
  $region22: #{slu_tagger_forward.1} parent=0 // pred_check
    _
  $region23: #{slu_tagger_forward.1} parent=0 // pred_check_branch
    %1409 = sbr.rel (0) target = $region25
  $region24: #{slu_tagger_forward.1} parent=0 // pred_region
    _
  $region25: #{slu_tagger_forward.1} parent=0 // pred_fallthru
    _

</llo_original>
